<compile_context>
chip_gen: v7x
topology: tpu7x:2x2x1
jax: 0.10.0
libtpu: 0.0.40
codegen_flags: <defaults>
</compile_context>

<pallas_src>
import functools

import jax
import jax.numpy as jnp
from jax import lax
from jax.experimental import pallas as pl
from jax.experimental.pallas import tpu as pltpu


# ----------------------------- stage 1: QKV projection -----------------------------

def _qkv_proj_kernel(x_ref, w_ref, b_ref, cs_ref, o_ref):
    # (tm, E) x (E, 3E) -> (tm, 3E); bias add + per-column scale (folds 1/sqrt(D) into q).
    acc = jnp.dot(x_ref[...], w_ref[...], preferred_element_type=jnp.float32)
    o_ref[...] = ((acc + b_ref[...]) * cs_ref[...]).astype(o_ref.dtype)


# ------------------- stage 2: flash attention + output projection ------------------

def _flash_attn_proj_kernel(qi_map_ref, ki_map_ref,
                            q_ref, k_ref, v_ref, wp_ref, bp_ref,
                            o_ref,
                            m_sc, l_sc, acc_sc, out_sc,
                            *, tq: int, tk: int, d: int):
    # Grid: (batch, tri_step, head).  tri_step enumerates only lower-triangular
    # (qi, ki) pairs via the scalar-prefetched maps -> no fully-masked no-op steps.
    s = pl.program_id(1)
    h = pl.program_id(2)
    num_heads = pl.num_programs(2)

    qi = qi_map_ref[s]
    ki = ki_map_ref[s]
    first_kv = ki == 0          # first kv tile of this q row
    last_kv = ki == qi          # diagonal tile == last kv tile of this q row (tq == tk)

    # Zero the cross-head projected-output accumulator once per (b, q row).
    @pl.when(jnp.logical_and(first_kv, h == 0))
    def _zero_out():
        out_sc[...] = jnp.zeros_like(out_sc)

    # Reset this head's online-softmax state at the start of each q row.
    @pl.when(first_kv)
    def _init_head():
        m_sc[h] = jnp.full((tq, 1), -jnp.inf, dtype=jnp.float32)
        l_sc[h] = jnp.zeros((tq, 1), dtype=jnp.float32)
        acc_sc[h] = jnp.zeros((tq, d), dtype=jnp.float32)

    def _kv_step(masked: bool):
        qh = q_ref[0, 0]        # (tq, d) bf16, 1/sqrt(d) already folded in
        kh = k_ref[0, 0]        # (tk, d) bf16
        vh = v_ref[0, 0]        # (tk, d) bf16
        s_mat = lax.dot_general(qh, kh, (((1,), (1,)), ((), ())),
                                preferred_element_type=jnp.float32)   # (tq, tk) f32
        if masked:              # diagonal tile only (qi == ki, tq == tk)
            row = lax.broadcasted_iota(jnp.int32, (tq, tk), 0)
            col = lax.broadcasted_iota(jnp.int32, (tq, tk), 1)
            s_mat = jnp.where(row >= col, s_mat, jnp.float32(-1e30))
        m_prev = m_sc[h]                                              # (tq, 1)
        m_new = jnp.maximum(m_prev, jnp.max(s_mat, axis=-1, keepdims=True))
        alpha = jnp.exp(m_prev - m_new)
        p = jnp.exp(s_mat - m_new)                                    # unnormalized, f32
        l_sc[h] = alpha * l_sc[h] + jnp.sum(p, axis=-1, keepdims=True)
        acc_sc[h] = alpha * acc_sc[h] + jnp.dot(
            p.astype(jnp.bfloat16), vh, preferred_element_type=jnp.float32)
        m_sc[h] = m_new

    @pl.when(jnp.logical_not(last_kv))
    def _off_diag():
        _kv_step(masked=False)

    @pl.when(last_kv)
    def _diag_and_finalize():
        _kv_step(masked=True)
        # Per-head finalize: one approx reciprocal (EUP), add this head's out-proj slice.
        inv_l = pl.reciprocal(l_sc[h], approx=True)                   # (tq, 1)
        o_h = (acc_sc[h] * inv_l).astype(jnp.bfloat16)                # (tq, d)
        out_sc[...] += jnp.dot(o_h, wp_ref[h], preferred_element_type=jnp.float32)

    # After the last head of the diagonal step: bias add + single lane-dense store.
    @pl.when(jnp.logical_and(last_kv, h == num_heads - 1))
    def _store():
        o_ref[0] = (out_sc[...] + bp_ref[...]).astype(o_ref.dtype)


# ---------------------------------- helpers ----------------------------------------

def _pad_tile(rows, cols, itemsize):
    return ((rows + 7) // 8) * 8 * ((cols + 127) // 128) * 128 * itemsize


def _vmem_limit(est_bytes):
    # Cap at 48 MiB: safe on v7x (64 MiB physical VMEM), above v5e/v6e scoped defaults.
    return int(min(max(est_bytes + (8 << 20), 32 << 20), 48 << 20))


def _choose_seq_tile(t):
    """Return (tile, padded_T): tile divides padded_T; whole sequence if small."""
    if t <= 256:
        return t, t
    for cand in (256, 128):
        if t % cand == 0:
            return cand, t
    t_pad = ((t + 127) // 128) * 128        # pad; causal mask hides the padded keys
    return 128, t_pad


def _choose_rows_tile(n):
    if n <= 512:
        return n
    for cand in (512, 256, 128, 64, 32, 16, 8):
        if n % cand == 0:
            return cand
    return n


# --------------------------------- main wrapper ------------------------------------

@functools.partial(jax.jit, static_argnames=("num_heads",))
def causal_self_attention(x, wqkv, bqkv, wproj, bproj, *, num_heads):
    """Fused causal self-attention forward (eval mode).

    x:     (B, T, E)
    wqkv:  (3E, E)   torch nn.Linear(E, 3E).weight layout
    bqkv:  (3E,)
    wproj: (E, E)    torch nn.Linear(E, E).weight layout
    bproj: (E,)
    """
    B, T, E = x.shape
    H = num_heads
    assert E % H == 0
    D = E // H
    E3 = 3 * E
    scale = float(D) ** -0.5

    tq, t_pad = _choose_seq_tile(T)
    tk = tq
    nq = t_pad // tq
    if t_pad != T:
        # Padded keys are masked away by causality for real query rows; padded query
        # rows are sliced off at the end.
        x = jnp.pad(x, ((0, 0), (0, t_pad - T), (0, 0)))

    # ---------------- host-side weight/layout prep (layout only) ----------------
    w_qkv_t = wqkv.T.astype(jnp.bfloat16)                              # (E, 3E)
    b_qkv = bqkv.astype(jnp.float32).reshape(1, E3)
    col_scale = jnp.concatenate(
        [jnp.full((E,), scale, jnp.float32), jnp.ones((2 * E,), jnp.float32)]
    ).reshape(1, E3)                                                   # 1/sqrt(D) on q cols
    wp_heads = wproj.T.astype(jnp.bfloat16).reshape(H, D, E)           # (H, D, E)
    bp = bproj.astype(jnp.float32).reshape(1, E)

    # -------------------------- stage 1: QKV projection --------------------------
    bt = B * t_pad
    tm = _choose_rows_tile(bt)
    x2d = x.reshape(bt, E).astype(jnp.bfloat16)

    proj_vmem = (2 * _pad_tile(tm, E, 2) + 2 * _pad_tile(E, E3, 2)
                 + 4 * _pad_tile(1, E3, 4) + 2 * _pad_tile(tm, E3, 2))
    proj_cost = pl.CostEstimate(
        flops=int(2 * bt * E * E3), transcendentals=0,
        bytes_accessed=int(bt * E * 2 + E * E3 * 2 + 2 * E3 * 4 + bt * E3 * 2))

    qkv2d = pl.pallas_call(
        _qkv_proj_kernel,
        out_shape=jax.ShapeDtypeStruct((bt, E3), jnp.bfloat16),
        grid_spec=pltpu.PrefetchScalarGridSpec(
            num_scalar_prefetch=0,
            grid=(bt // tm,),
            in_specs=[
                pl.BlockSpec((tm, E), lambda i: (i, 0)),       # x rows (streamed)
                pl.BlockSpec((E, E3), lambda i: (0, 0)),       # W_qkv^T (resident)
                pl.BlockSpec((1, E3), lambda i: (0, 0)),       # bias
                pl.BlockSpec((1, E3), lambda i: (0, 0)),       # per-column scale
            ],
            out_specs=pl.BlockSpec((tm, E3), lambda i: (i, 0)),
        ),
        compiler_params=pltpu.CompilerParams(
            dimension_semantics=("parallel",),
            vmem_limit_bytes=_vmem_limit(proj_vmem)),
        cost_estimate=proj_cost,
    )(x2d, w_qkv_t, b_qkv, col_scale)

    # (B*Tp, 3E) -> per-head (B, H, Tp, D) bf16; q already carries the 1/sqrt(D) scale.
    qkv = qkv2d.reshape(B, t_pad, 3, H, D)
    q = jnp.transpose(qkv[:, :, 0], (0, 2, 1, 3))
    k = jnp.transpose(qkv[:, :, 1], (0, 2, 1, 3))
    v = jnp.transpose(qkv[:, :, 2], (0, 2, 1, 3))

    # ----------- stage 2: flash attention + output projection (fused) -----------
    qi_idx, ki_idx = [], []
    for q_i in range(nq):
        for k_i in range(q_i + 1):
            qi_idx.append(q_i)
            ki_idx.append(k_i)
    n_tri = len(qi_idx)
    qi_map = jnp.asarray(qi_idx, dtype=jnp.int32)
    ki_map = jnp.asarray(ki_idx, dtype=jnp.int32)

    att_vmem = (6 * _pad_tile(tq, D, 2)                       # q/k/v blocks (dbl-buffered)
                + 2 * H * _pad_tile(D, E, 2) + 2 * _pad_tile(1, E, 4)   # Wp, bias
                + 2 * _pad_tile(tq, E, 4)                     # output blocks
                + 2 * H * _pad_tile(tq, 1, 4) + H * _pad_tile(tq, D, 4)  # m, l, acc
                + _pad_tile(tq, E, 4))                        # cross-head accumulator
    out_itemsize = jnp.dtype(x.dtype).itemsize
    att_cost = pl.CostEstimate(
        flops=int(4 * B * H * n_tri * tq * tk * D + 2 * B * t_pad * E * E),
        transcendentals=int(B * H * n_tri * tq * tk),
        bytes_accessed=int(3 * B * H * n_tri * tq * D * 2 + H * D * E * 2 + E * 4
                           + B * t_pad * E * out_itemsize))

    kernel = functools.partial(_flash_attn_proj_kernel, tq=tq, tk=tk, d=D)
    out = pl.pallas_call(
        kernel,
        out_shape=jax.ShapeDtypeStruct((B, t_pad, E), x.dtype),
        grid_spec=pltpu.PrefetchScalarGridSpec(
            num_scalar_prefetch=2,                            # qi_map, ki_map in SMEM
            grid=(B, n_tri, H),
            in_specs=[
                pl.BlockSpec((1, 1, tq, D), lambda b, s, h, qm, km: (b, h, qm[s], 0)),
                pl.BlockSpec((1, 1, tk, D), lambda b, s, h, qm, km: (b, h, km[s], 0)),
                pl.BlockSpec((1, 1, tk, D), lambda b, s, h, qm, km: (b, h, km[s], 0)),
                pl.BlockSpec((H, D, E), lambda b, s, h, qm, km: (0, 0, 0)),   # resident Wp
                pl.BlockSpec((1, E), lambda b, s, h, qm, km: (0, 0)),         # bias
            ],
            out_specs=pl.BlockSpec((1, tq, E), lambda b, s, h, qm, km: (b, qm[s], 0)),
            scratch_shapes=[
                pltpu.VMEM((H, tq, 1), jnp.float32),   # running max m (per head)
                pltpu.VMEM((H, tq, 1), jnp.float32),   # running sum l (per head)
                pltpu.VMEM((H, tq, D), jnp.float32),   # per-head attention accumulator
                pltpu.VMEM((tq, E), jnp.float32),      # cross-head projected output
            ],
        ),
        compiler_params=pltpu.CompilerParams(
            dimension_semantics=("parallel", "arbitrary", "arbitrary"),
            vmem_limit_bytes=_vmem_limit(att_vmem)),
        cost_estimate=att_cost,
    )(qi_map, ki_map, q, k, v, wp_heads, bp)

    return out[:, :T, :] if t_pad != T else out


# --------------------------------- reference ----------------------------------------

def reference(x, wqkv, bqkv, wproj, bproj, num_heads):
    """Pure-JAX reference mirroring the PyTorch module (eval mode), with bf16 matmul
    operands / f32 accumulation to match the kernel's MXU precision."""
    B, T, E = x.shape
    H = num_heads
    D = E // H
    scale = D ** -0.5
    bf = jnp.bfloat16

    qkv = jnp.dot(x.reshape(B * T, E).astype(bf), wqkv.T.astype(bf),
                  preferred_element_type=jnp.float32).reshape(B, T, 3 * E) + bqkv
    qkv = qkv.reshape(B, T, 3, H, D)
    q, k, v = qkv[:, :, 0], qkv[:, :, 1], qkv[:, :, 2]          # (B, T, H, D)
    q = jnp.transpose(q, (0, 2, 1, 3)) * scale                  # (B, H, T, D)
    k = jnp.transpose(k, (0, 2, 1, 3))
    v = jnp.transpose(v, (0, 2, 1, 3))
    s = jnp.einsum("bhqd,bhkd->bhqk", q.astype(bf), k.astype(bf),
                   preferred_element_type=jnp.float32)
    mask = jnp.tril(jnp.ones((T, T), bool))
    s = jnp.where(mask[None, None], s, -jnp.inf)
    p = jax.nn.softmax(s, axis=-1)
    o = jnp.einsum("bhqk,bhkd->bhqd", p.astype(bf), v.astype(bf),
                   preferred_element_type=jnp.float32)
    o = jnp.transpose(o, (0, 2, 1, 3)).reshape(B, T, E)
    return (jnp.dot(o.reshape(B * T, E).astype(bf), wproj.T.astype(bf),
                    preferred_element_type=jnp.float32).reshape(B, T, E) + bproj)


if __name__ == "__main__":
    # Small, module-consistent shapes: per_head_dim = 8, T <= block_size (64).
    B, T, E, H = 2, 8, 32, 4

    key = jax.random.PRNGKey(0)
    kx, kw1, kb1, kw2, kb2 = jax.random.split(key, 5)

    x = jax.random.normal(kx, (B, T, E), dtype=jnp.float32)
    # nn.Linear(E, 3E): weight (3E, E), bias (3E,);  nn.Linear(E, E): weight (E, E), bias (E,).
    wqkv = jax.random.normal(kw1, (3 * E, E), dtype=jnp.float32) * (E ** -0.5)
    bqkv = jax.random.normal(kb1, (3 * E,), dtype=jnp.float32) * 0.02
    wproj = jax.random.normal(kw2, (E, E), dtype=jnp.float32) * (E ** -0.5)
    bproj = jax.random.normal(kb2, (E,), dtype=jnp.float32) * 0.02

    out = causal_self_attention(x, wqkv, bqkv, wproj, bproj, num_heads=H)
    out = jax.block_until_ready(out)

    ref = reference(x, wqkv, bqkv, wproj, bproj, H)
    assert out.shape == (B, T, E)
    max_err = float(jnp.max(jnp.abs(out - ref)))
    assert jnp.allclose(out, ref, atol=2e-2, rtol=2e-2), (
        f"mismatch vs reference (max abs err {max_err})")

    print("KERNEL_OK")
</pallas_src>

<mosaic_0001>
module attributes {stable_mosaic.version = 11 : i64} {
  func.func @_qkv_proj_kernel(%arg0: i32, %arg1: memref<16x32xbf16, #tpu.memory_space<vmem>>, %arg2: memref<32x96xbf16, #tpu.memory_space<vmem>>, %arg3: memref<1x96xf32, #tpu.memory_space<vmem>>, %arg4: memref<1x96xf32, #tpu.memory_space<vmem>>, %arg5: memref<16x96xbf16, #tpu.memory_space<vmem>>) attributes {dimension_semantics = [#tpu.dimension_semantics<parallel>], iteration_bounds = array<i64: 1>, scalar_prefetch = 0 : i64, scratch_operands = 0 : i64, tpu.core_type = #tpu.core_type<tc>, window_params = [{transform_indices = @transform_0, window_bounds = array<i64: 16, 32>}, {pipeline_mode = #tpu.pipeline_mode<synchronous>, transform_indices = @transform_1, window_bounds = array<i64: 32, 96>}, {pipeline_mode = #tpu.pipeline_mode<synchronous>, transform_indices = @transform_2, window_bounds = array<i64: 1, 96>}, {pipeline_mode = #tpu.pipeline_mode<synchronous>, transform_indices = @transform_3, window_bounds = array<i64: 1, 96>}, {transform_indices = @transform_4, window_bounds = array<i64: 16, 96>}]} {
    %c0 = arith.constant 0 : index
    %c0_0 = arith.constant 0 : index
    %0 = vector.load %arg1[%c0, %c0_0] : memref<16x32xbf16, #tpu.memory_space<vmem>>, vector<16x32xbf16>
    %c0_1 = arith.constant 0 : index
    %c0_2 = arith.constant 0 : index
    %1 = vector.load %arg2[%c0_1, %c0_2] : memref<32x96xbf16, #tpu.memory_space<vmem>>, vector<32x96xbf16>
    %cst = arith.constant dense<0.000000e+00> : vector<16x96xf32>
    %2 = tpu.matmul %0, %1, %cst {dimension_numbers = #tpu.dot_dimension_numbers<[1], [0], [0], [1], [0, 0, 1, 1], [], []>} : vector<16x32xbf16>, vector<32x96xbf16>, vector<16x96xf32> -> vector<16x96xf32>
    %c0_3 = arith.constant 0 : index
    %c0_4 = arith.constant 0 : index
    %3 = vector.load %arg3[%c0_3, %c0_4] : memref<1x96xf32, #tpu.memory_space<vmem>>, vector<1x96xf32>
    %4 = vector.broadcast %3 : vector<1x96xf32> to vector<16x96xf32>
    %5 = arith.addf %2, %4 : vector<16x96xf32>
    %c0_5 = arith.constant 0 : index
    %c0_6 = arith.constant 0 : index
    %6 = vector.load %arg4[%c0_5, %c0_6] : memref<1x96xf32, #tpu.memory_space<vmem>>, vector<1x96xf32>
    %7 = vector.broadcast %6 : vector<1x96xf32> to vector<16x96xf32>
    %8 = arith.mulf %5, %7 : vector<16x96xf32>
    %9 = arith.truncf %8 : vector<16x96xf32> to vector<16x96xbf16>
    %c0_7 = arith.constant 0 : index
    %c0_8 = arith.constant 0 : index
    %10 = vector.load %arg5[%c0_7, %c0_8] : memref<16x96xbf16, #tpu.memory_space<vmem>>, vector<16x96xbf16>
    tpu.vector_store %arg5[%c0_7, %c0_8], %9 {strides = array<i32>} : memref<16x96xbf16, #tpu.memory_space<vmem>>, vector<16x96xbf16>,
    return
  }
  func.func @transform_0(%arg0: i32) -> (i32, i32) {
    %c0_i32 = arith.constant 0 : i32
    %c0_i32_0 = arith.constant 0 : i32
    return %arg0, %c0_i32 : i32, i32
  }
  func.func @transform_1(%arg0: i32) -> (i32, i32) {
    %c0_i32 = arith.constant 0 : i32
    %c0_i32_0 = arith.constant 0 : i32
    %c0_i32_1 = arith.constant 0 : i32
    return %c0_i32, %c0_i32_0 : i32, i32
  }
  func.func @transform_2(%arg0: i32) -> (i32, i32) {
    %c0_i32 = arith.constant 0 : i32
    %c0_i32_0 = arith.constant 0 : i32
    %c0_i32_1 = arith.constant 0 : i32
    return %c0_i32, %c0_i32_0 : i32, i32
  }
  func.func @transform_3(%arg0: i32) -> (i32, i32) {
    %c0_i32 = arith.constant 0 : i32
    %c0_i32_0 = arith.constant 0 : i32
    %c0_i32_1 = arith.constant 0 : i32
    return %c0_i32, %c0_i32_0 : i32, i32
  }
  func.func @transform_4(%arg0: i32) -> (i32, i32) {
    %c0_i32 = arith.constant 0 : i32
    %c0_i32_0 = arith.constant 0 : i32
    return %arg0, %c0_i32 : i32, i32
  }
}

module attributes {stable_mosaic.version = 11 : i64} {
  func.func @_flash_attn_proj_kernel(%arg0: i32, %arg1: i32, %arg2: i32, %arg3: memref<1xi32, #tpu.memory_space<smem>>, %arg4: memref<1xi32, #tpu.memory_space<smem>>, %arg5: memref<1x1x8x8xbf16, #tpu.memory_space<vmem>>, %arg6: memref<1x1x8x8xbf16, #tpu.memory_space<vmem>>, %arg7: memref<1x1x8x8xbf16, #tpu.memory_space<vmem>>, %arg8: memref<4x8x32xbf16, #tpu.memory_space<vmem>>, %arg9: memref<1x32xf32, #tpu.memory_space<vmem>>, %arg10: memref<1x8x32xf32, #tpu.memory_space<vmem>>, %arg11: memref<4x8x1xf32, #tpu.memory_space<vmem>>, %arg12: memref<4x8x1xf32, #tpu.memory_space<vmem>>, %arg13: memref<4x8x8xf32, #tpu.memory_space<vmem>>, %arg14: memref<8x32xf32, #tpu.memory_space<vmem>>) attributes {dimension_semantics = [#tpu.dimension_semantics<parallel>, #tpu.dimension_semantics<arbitrary>, #tpu.dimension_semantics<arbitrary>], iteration_bounds = array<i64: 2, 1, 4>, scalar_prefetch = 2 : i64, scratch_operands = 4 : i64, tpu.core_type = #tpu.core_type<tc>, window_params = [{transform_indices = @transform_0, window_bounds = array<i64: 1, 1, 8, 8>}, {transform_indices = @transform_1, window_bounds = array<i64: 1, 1, 8, 8>}, {transform_indices = @transform_2, window_bounds = array<i64: 1, 1, 8, 8>}, {pipeline_mode = #tpu.pipeline_mode<synchronous>, transform_indices = @transform_3, window_bounds = array<i64: 4, 8, 32>}, {pipeline_mode = #tpu.pipeline_mode<synchronous>, transform_indices = @transform_4, window_bounds = array<i64: 1, 32>}, {transform_indices = @transform_5, window_bounds = array<i64: 1, 8, 32>}]} {
    %0 = arith.index_cast %arg1 : i32 to index
    %1 = memref.load %arg3[%0] : memref<1xi32, #tpu.memory_space<smem>>
    %2 = arith.index_cast %arg1 : i32 to index
    %3 = memref.load %arg4[%2] : memref<1xi32, #tpu.memory_space<smem>>
    %c0_i32 = arith.constant 0 : i32
    %4 = arith.cmpi eq, %3, %c0_i32 : i32
    %5 = arith.cmpi eq, %3, %1 : i32
    %c0_i32_0 = arith.constant 0 : i32
    %6 = arith.cmpi eq, %arg2, %c0_i32_0 : i32
    %7 = arith.andi %4, %6 : i1
    %8 = arith.extui %7 : i1 to i32
    %c0_i32_1 = arith.constant 0 : i32
    %9 = arith.cmpi ne, %8, %c0_i32_1 : i32
    scf.if %9 {
      %cst = arith.constant 0.000000e+00 : f32
      %21 = vector.broadcast %cst : f32 to vector<8x32xf32>
      %c0 = arith.constant 0 : index
      %c0_6 = arith.constant 0 : index
      %22 = vector.load %arg14[%c0, %c0_6] : memref<8x32xf32, #tpu.memory_space<vmem>>, vector<8x32xf32>
      tpu.vector_store %arg14[%c0, %c0_6], %21 {strides = array<i32>} : memref<8x32xf32, #tpu.memory_space<vmem>>, vector<8x32xf32>,
    } else {
    }
    %10 = arith.extui %4 : i1 to i32
    %c0_i32_2 = arith.constant 0 : i32
    %11 = arith.cmpi ne, %10, %c0_i32_2 : i32
    scf.if %11 {
      %cst = arith.constant 0xFF800000 : f32
      %21 = vector.broadcast %cst : f32 to vector<8x1xf32>
      %22 = arith.index_cast %arg2 : i32 to index
      %c0 = arith.constant 0 : index
      %c0_6 = arith.constant 0 : index
      %23 = vector.load %arg11[%22, %c0, %c0_6] : memref<4x8x1xf32, #tpu.memory_space<vmem>>, vector<1x8x1xf32>
      %24 = vector.shape_cast %23 : vector<1x8x1xf32> to vector<8x1xf32>
      %25 = vector.shape_cast %21 : vector<8x1xf32> to vector<1x8x1xf32>
      tpu.vector_store %arg11[%22, %c0, %c0_6], %25 {strides = array<i32>} : memref<4x8x1xf32, #tpu.memory_space<vmem>>, vector<1x8x1xf32>,
      %cst_7 = arith.constant 0.000000e+00 : f32
      %26 = vector.broadcast %cst_7 : f32 to vector<8x1xf32>
      %27 = arith.index_cast %arg2 : i32 to index
      %c0_8 = arith.constant 0 : index
      %c0_9 = arith.constant 0 : index
      %28 = vector.load %arg12[%27, %c0_8, %c0_9] : memref<4x8x1xf32, #tpu.memory_space<vmem>>, vector<1x8x1xf32>
      %29 = vector.shape_cast %28 : vector<1x8x1xf32> to vector<8x1xf32>
      %30 = vector.shape_cast %26 : vector<8x1xf32> to vector<1x8x1xf32>
      tpu.vector_store %arg12[%27, %c0_8, %c0_9], %30 {strides = array<i32>} : memref<4x8x1xf32, #tpu.memory_space<vmem>>, vector<1x8x1xf32>,
      %cst_10 = arith.constant 0.000000e+00 : f32
      %31 = vector.broadcast %cst_10 : f32 to vector<8x8xf32>
      %32 = arith.index_cast %arg2 : i32 to index
      %c0_11 = arith.constant 0 : index
      %c0_12 = arith.constant 0 : index
      %33 = vector.load %arg13[%32, %c0_11, %c0_12] : memref<4x8x8xf32, #tpu.memory_space<vmem>>, vector<1x8x8xf32>
      %34 = vector.shape_cast %33 : vector<1x8x8xf32> to vector<8x8xf32>
      %35 = vector.shape_cast %31 : vector<8x8xf32> to vector<1x8x8xf32>
      tpu.vector_store %arg13[%32, %c0_11, %c0_12], %35 {strides = array<i32>} : memref<4x8x8xf32, #tpu.memory_space<vmem>>, vector<1x8x8xf32>,
    } else {
    }
    %true = arith.constant true
    %12 = arith.xori %5, %true : i1
    %13 = arith.extui %12 : i1 to i32
    %c0_i32_3 = arith.constant 0 : i32
    %14 = arith.cmpi ne, %13, %c0_i32_3 : i32
    scf.if %14 {
      %c0 = arith.constant 0 : index
      %c0_6 = arith.constant 0 : index
      %c0_7 = arith.constant 0 : index
      %c0_8 = arith.constant 0 : index
      %21 = vector.load %arg5[%c0, %c0_6, %c0_7, %c0_8] : memref<1x1x8x8xbf16, #tpu.memory_space<vmem>>, vector<1x1x8x8xbf16>
      %22 = vector.shape_cast %21 : vector<1x1x8x8xbf16> to vector<8x8xbf16>
      %c0_9 = arith.constant 0 : index
      %c0_10 = arith.constant 0 : index
      %c0_11 = arith.constant 0 : index
      %c0_12 = arith.constant 0 : index
      %23 = vector.load %arg6[%c0_9, %c0_10, %c0_11, %c0_12] : memref<1x1x8x8xbf16, #tpu.memory_space<vmem>>, vector<1x1x8x8xbf16>
      %24 = vector.shape_cast %23 : vector<1x1x8x8xbf16> to vector<8x8xbf16>
      %c0_13 = arith.constant 0 : index
      %c0_14 = arith.constant 0 : index
      %c0_15 = arith.constant 0 : index
      %c0_16 = arith.constant 0 : index
      %25 = vector.load %arg7[%c0_13, %c0_14, %c0_15, %c0_16] : memref<1x1x8x8xbf16, #tpu.memory_space<vmem>>, vector<1x1x8x8xbf16>
      %26 = vector.shape_cast %25 : vector<1x1x8x8xbf16> to vector<8x8xbf16>
      %cst = arith.constant dense<0.000000e+00> : vector<8x8xf32>
      %27 = tpu.matmul %22, %24, %cst {dimension_numbers = #tpu.dot_dimension_numbers<[1], [1], [0], [0], [0, 0, 1, 0], [], []>} : vector<8x8xbf16>, vector<8x8xbf16>, vector<8x8xf32> -> vector<8x8xf32>
      %28 = arith.index_cast %arg2 : i32 to index
      %c0_17 = arith.constant 0 : index
      %c0_18 = arith.constant 0 : index
      %29 = vector.load %arg11[%28, %c0_17, %c0_18] : memref<4x8x1xf32, #tpu.memory_space<vmem>>, vector<1x8x1xf32>
      %30 = vector.shape_cast %29 : vector<1x8x1xf32> to vector<8x1xf32>
      %cst_19 = arith.constant dense<0xFF800000> : vector<8xf32>
      %31 = vector.multi_reduction <maximumf>, %27, %cst_19 [1] : vector<8x8xf32> to vector<8xf32>
      %32 = vector.shape_cast %31 : vector<8xf32> to vector<8x1xf32>
      %33 = arith.maximumf %30, %32 : vector<8x1xf32>
      %34 = arith.subf %30, %33 : vector<8x1xf32>
      %35 = math.exp %34 : vector<8x1xf32>
      %36 = vector.broadcast %33 : vector<8x1xf32> to vector<8x8xf32>
      %37 = arith.subf %27, %36 : vector<8x8xf32>
      %38 = math.exp %37 : vector<8x8xf32>
      %39 = arith.index_cast %arg2 : i32 to index
      %c0_20 = arith.constant 0 : index
      %c0_21 = arith.constant 0 : index
      %40 = vector.load %arg12[%39, %c0_20, %c0_21] : memref<4x8x1xf32, #tpu.memory_space<vmem>>, vector<1x8x1xf32>
      %41 = vector.shape_cast %40 : vector<1x8x1xf32> to vector<8x1xf32>
      %42 = arith.mulf %35, %41 : vector<8x1xf32>
      %cst_22 = arith.constant dense<0.000000e+00> : vector<8xf32>
      %43 = vector.multi_reduction <add>, %38, %cst_22 [1] : vector<8x8xf32> to vector<8xf32>
      %44 = vector.shape_cast %43 : vector<8xf32> to vector<8x1xf32>
      %45 = arith.addf %42, %44 : vector<8x1xf32>
      %46 = arith.index_cast %arg2 : i32 to index
      %c0_23 = arith.constant 0 : index
      %c0_24 = arith.constant 0 : index
      %47 = vector.load %arg12[%46, %c0_23, %c0_24] : memref<4x8x1xf32, #tpu.memory_space<vmem>>, vector<1x8x1xf32>
      %48 = vector.shape_cast %47 : vector<1x8x1xf32> to vector<8x1xf32>
      %49 = vector.shape_cast %45 : vector<8x1xf32> to vector<1x8x1xf32>
      tpu.vector_store %arg12[%46, %c0_23, %c0_24], %49 {strides = array<i32>} : memref<4x8x1xf32, #tpu.memory_space<vmem>>, vector<1x8x1xf32>,
      %50 = arith.index_cast %arg2 : i32 to index
      %c0_25 = arith.constant 0 : index
      %c0_26 = arith.constant 0 : index
      %51 = vector.load %arg13[%50, %c0_25, %c0_26] : memref<4x8x8xf32, #tpu.memory_space<vmem>>, vector<1x8x8xf32>
      %52 = vector.shape_cast %51 : vector<1x8x8xf32> to vector<8x8xf32>
      %53 = vector.broadcast %35 : vector<8x1xf32> to vector<8x8xf32>
      %54 = arith.mulf %53, %52 : vector<8x8xf32>
      %55 = arith.truncf %38 : vector<8x8xf32> to vector<8x8xbf16>
      %cst_27 = arith.constant dense<0.000000e+00> : vector<8x8xf32>
      %56 = tpu.matmul %55, %26, %cst_27 {dimension_numbers = #tpu.dot_dimension_numbers<[1], [0], [0], [1], [0, 0, 1, 1], [], []>} : vector<8x8xbf16>, vector<8x8xbf16>, vector<8x8xf32> -> vector<8x8xf32>
      %57 = arith.addf %54, %56 : vector<8x8xf32>
      %58 = arith.index_cast %arg2 : i32 to index
      %c0_28 = arith.constant 0 : index
      %c0_29 = arith.constant 0 : index
      %59 = vector.load %arg13[%58, %c0_28, %c0_29] : memref<4x8x8xf32, #tpu.memory_space<vmem>>, vector<1x8x8xf32>
      %60 = vector.shape_cast %59 : vector<1x8x8xf32> to vector<8x8xf32>
      %61 = vector.shape_cast %57 : vector<8x8xf32> to vector<1x8x8xf32>
      tpu.vector_store %arg13[%58, %c0_28, %c0_29], %61 {strides = array<i32>} : memref<4x8x8xf32, #tpu.memory_space<vmem>>, vector<1x8x8xf32>,
      %62 = arith.index_cast %arg2 : i32 to index
      %c0_30 = arith.constant 0 : index
      %c0_31 = arith.constant 0 : index
      %63 = vector.load %arg11[%62, %c0_30, %c0_31] : memref<4x8x1xf32, #tpu.memory_space<vmem>>, vector<1x8x1xf32>
      %64 = vector.shape_cast %63 : vector<1x8x1xf32> to vector<8x1xf32>
      %65 = vector.shape_cast %33 : vector<8x1xf32> to vector<1x8x1xf32>
      tpu.vector_store %arg11[%62, %c0_30, %c0_31], %65 {strides = array<i32>} : memref<4x8x1xf32, #tpu.memory_space<vmem>>, vector<1x8x1xf32>,
    } else {
    }
    %15 = arith.extui %5 : i1 to i32
    %c0_i32_4 = arith.constant 0 : i32
    %16 = arith.cmpi ne, %15, %c0_i32_4 : i32
    scf.if %16 {
      %c0 = arith.constant 0 : index
      %c0_6 = arith.constant 0 : index
      %c0_7 = arith.constant 0 : index
      %c0_8 = arith.constant 0 : index
      %21 = vector.load %arg5[%c0, %c0_6, %c0_7, %c0_8] : memref<1x1x8x8xbf16, #tpu.memory_space<vmem>>, vector<1x1x8x8xbf16>
      %22 = vector.shape_cast %21 : vector<1x1x8x8xbf16> to vector<8x8xbf16>
      %c0_9 = arith.constant 0 : index
      %c0_10 = arith.constant 0 : index
      %c0_11 = arith.constant 0 : index
      %c0_12 = arith.constant 0 : index
      %23 = vector.load %arg6[%c0_9, %c0_10, %c0_11, %c0_12] : memref<1x1x8x8xbf16, #tpu.memory_space<vmem>>, vector<1x1x8x8xbf16>
      %24 = vector.shape_cast %23 : vector<1x1x8x8xbf16> to vector<8x8xbf16>
      %c0_13 = arith.constant 0 : index
      %c0_14 = arith.constant 0 : index
      %c0_15 = arith.constant 0 : index
      %c0_16 = arith.constant 0 : index
      %25 = vector.load %arg7[%c0_13, %c0_14, %c0_15, %c0_16] : memref<1x1x8x8xbf16, #tpu.memory_space<vmem>>, vector<1x1x8x8xbf16>
      %26 = vector.shape_cast %25 : vector<1x1x8x8xbf16> to vector<8x8xbf16>
      %cst = arith.constant dense<0.000000e+00> : vector<8x8xf32>
      %27 = tpu.matmul %22, %24, %cst {dimension_numbers = #tpu.dot_dimension_numbers<[1], [1], [0], [0], [0, 0, 1, 0], [], []>} : vector<8x8xbf16>, vector<8x8xbf16>, vector<8x8xf32> -> vector<8x8xf32>
      %28 = tpu.iota {dimensions = array<i32: 0>} : vector<8x8xi32>
      %29 = tpu.iota {dimensions = array<i32: 1>} : vector<8x8xi32>
      %30 = arith.cmpi sge, %28, %29 : vector<8x8xi32>
      %cst_17 = arith.constant -1.000000e+30 : f32
      %31 = vector.broadcast %cst_17 : f32 to vector<8x8xf32>
      %32 = arith.select %30, %27, %31 : vector<8x8xi1>, vector<8x8xf32>
      %33 = arith.index_cast %arg2 : i32 to index
      %c0_18 = arith.constant 0 : index
      %c0_19 = arith.constant 0 : index
      %34 = vector.load %arg11[%33, %c0_18, %c0_19] : memref<4x8x1xf32, #tpu.memory_space<vmem>>, vector<1x8x1xf32>
      %35 = vector.shape_cast %34 : vector<1x8x1xf32> to vector<8x1xf32>
      %cst_20 = arith.constant dense<0xFF800000> : vector<8xf32>
      %36 = vector.multi_reduction <maximumf>, %32, %cst_20 [1] : vector<8x8xf32> to vector<8xf32>
      %37 = vector.shape_cast %36 : vector<8xf32> to vector<8x1xf32>
      %38 = arith.maximumf %35, %37 : vector<8x1xf32>
      %39 = arith.subf %35, %38 : vector<8x1xf32>
      %40 = math.exp %39 : vector<8x1xf32>
      %41 = vector.broadcast %38 : vector<8x1xf32> to vector<8x8xf32>
      %42 = arith.subf %32, %41 : vector<8x8xf32>
      %43 = math.exp %42 : vector<8x8xf32>
      %44 = arith.index_cast %arg2 : i32 to index
      %c0_21 = arith.constant 0 : index
      %c0_22 = arith.constant 0 : index
      %45 = vector.load %arg12[%44, %c0_21, %c0_22] : memref<4x8x1xf32, #tpu.memory_space<vmem>>, vector<1x8x1xf32>
      %46 = vector.shape_cast %45 : vector<1x8x1xf32> to vector<8x1xf32>
      %47 = arith.mulf %40, %46 : vector<8x1xf32>
      %cst_23 = arith.constant dense<0.000000e+00> : vector<8xf32>
      %48 = vector.multi_reduction <add>, %43, %cst_23 [1] : vector<8x8xf32> to vector<8xf32>
      %49 = vector.shape_cast %48 : vector<8xf32> to vector<8x1xf32>
      %50 = arith.addf %47, %49 : vector<8x1xf32>
      %51 = arith.index_cast %arg2 : i32 to index
      %c0_24 = arith.constant 0 : index
      %c0_25 = arith.constant 0 : index
      %52 = vector.load %arg12[%51, %c0_24, %c0_25] : memref<4x8x1xf32, #tpu.memory_space<vmem>>, vector<1x8x1xf32>
      %53 = vector.shape_cast %52 : vector<1x8x1xf32> to vector<8x1xf32>
      %54 = vector.shape_cast %50 : vector<8x1xf32> to vector<1x8x1xf32>
      tpu.vector_store %arg12[%51, %c0_24, %c0_25], %54 {strides = array<i32>} : memref<4x8x1xf32, #tpu.memory_space<vmem>>, vector<1x8x1xf32>,
      %55 = arith.index_cast %arg2 : i32 to index
      %c0_26 = arith.constant 0 : index
      %c0_27 = arith.constant 0 : index
      %56 = vector.load %arg13[%55, %c0_26, %c0_27] : memref<4x8x8xf32, #tpu.memory_space<vmem>>, vector<1x8x8xf32>
      %57 = vector.shape_cast %56 : vector<1x8x8xf32> to vector<8x8xf32>
      %58 = vector.broadcast %40 : vector<8x1xf32> to vector<8x8xf32>
      %59 = arith.mulf %58, %57 : vector<8x8xf32>
      %60 = arith.truncf %43 : vector<8x8xf32> to vector<8x8xbf16>
      %cst_28 = arith.constant dense<0.000000e+00> : vector<8x8xf32>
      %61 = tpu.matmul %60, %26, %cst_28 {dimension_numbers = #tpu.dot_dimension_numbers<[1], [0], [0], [1], [0, 0, 1, 1], [], []>} : vector<8x8xbf16>, vector<8x8xbf16>, vector<8x8xf32> -> vector<8x8xf32>
      %62 = arith.addf %59, %61 : vector<8x8xf32>
      %63 = arith.index_cast %arg2 : i32 to index
      %c0_29 = arith.constant 0 : index
      %c0_30 = arith.constant 0 : index
      %64 = vector.load %arg13[%63, %c0_29, %c0_30] : memref<4x8x8xf32, #tpu.memory_space<vmem>>, vector<1x8x8xf32>
      %65 = vector.shape_cast %64 : vector<1x8x8xf32> to vector<8x8xf32>
      %66 = vector.shape_cast %62 : vector<8x8xf32> to vector<1x8x8xf32>
      tpu.vector_store %arg13[%63, %c0_29, %c0_30], %66 {strides = array<i32>} : memref<4x8x8xf32, #tpu.memory_space<vmem>>, vector<1x8x8xf32>,
      %67 = arith.index_cast %arg2 : i32 to index
      %c0_31 = arith.constant 0 : index
      %c0_32 = arith.constant 0 : index
      %68 = vector.load %arg11[%67, %c0_31, %c0_32] : memref<4x8x1xf32, #tpu.memory_space<vmem>>, vector<1x8x1xf32>
      %69 = vector.shape_cast %68 : vector<1x8x1xf32> to vector<8x1xf32>
      %70 = vector.shape_cast %38 : vector<8x1xf32> to vector<1x8x1xf32>
      tpu.vector_store %arg11[%67, %c0_31, %c0_32], %70 {strides = array<i32>} : memref<4x8x1xf32, #tpu.memory_space<vmem>>, vector<1x8x1xf32>,
      %71 = arith.index_cast %arg2 : i32 to index
      %c0_33 = arith.constant 0 : index
      %c0_34 = arith.constant 0 : index
      %72 = vector.load %arg12[%71, %c0_33, %c0_34] : memref<4x8x1xf32, #tpu.memory_space<vmem>>, vector<1x8x1xf32>
      %73 = vector.shape_cast %72 : vector<1x8x1xf32> to vector<8x1xf32>
      %74 = tpu.reciprocal %73 {approx = true} : vector<8x1xf32> -> vector<8x1xf32>
      %75 = arith.index_cast %arg2 : i32 to index
      %c0_35 = arith.constant 0 : index
      %c0_36 = arith.constant 0 : index
      %76 = vector.load %arg13[%75, %c0_35, %c0_36] : memref<4x8x8xf32, #tpu.memory_space<vmem>>, vector<1x8x8xf32>
      %77 = vector.shape_cast %76 : vector<1x8x8xf32> to vector<8x8xf32>
      %78 = vector.broadcast %74 : vector<8x1xf32> to vector<8x8xf32>
      %79 = arith.mulf %77, %78 : vector<8x8xf32>
      %80 = arith.truncf %79 : vector<8x8xf32> to vector<8x8xbf16>
      %c0_37 = arith.constant 0 : index
      %c0_38 = arith.constant 0 : index
      %81 = vector.load %arg14[%c0_37, %c0_38] : memref<8x32xf32, #tpu.memory_space<vmem>>, vector<8x32xf32>
      %82 = arith.index_cast %arg2 : i32 to index
      %c0_39 = arith.constant 0 : index
      %c0_40 = arith.constant 0 : index
      %83 = vector.load %arg8[%82, %c0_39, %c0_40] : memref<4x8x32xbf16, #tpu.memory_space<vmem>>, vector<1x8x32xbf16>
      %84 = vector.shape_cast %83 : vector<1x8x32xbf16> to vector<8x32xbf16>
      %cst_41 = arith.constant dense<0.000000e+00> : vector<8x32xf32>
      %85 = tpu.matmul %80, %84, %cst_41 {dimension_numbers = #tpu.dot_dimension_numbers<[1], [0], [0], [1], [0, 0, 1, 1], [], []>} : vector<8x8xbf16>, vector<8x32xbf16>, vector<8x32xf32> -> vector<8x32xf32>
      %86 = arith.addf %81, %85 : vector<8x32xf32>
      %c0_42 = arith.constant 0 : index
      %c0_43 = arith.constant 0 : index
      %87 = vector.load %arg14[%c0_42, %c0_43] : memref<8x32xf32, #tpu.memory_space<vmem>>, vector<8x32xf32>
      tpu.vector_store %arg14[%c0_42, %c0_43], %86 {strides = array<i32>} : memref<8x32xf32, #tpu.memory_space<vmem>>, vector<8x32xf32>,
    } else {
    }
    %c3_i32 = arith.constant 3 : i32
    %17 = arith.cmpi eq, %arg2, %c3_i32 : i32
    %18 = arith.andi %5, %17 : i1
    %19 = arith.extui %18 : i1 to i32
    %c0_i32_5 = arith.constant 0 : i32
    %20 = arith.cmpi ne, %19, %c0_i32_5 : i32
    scf.if %20 {
      %c0 = arith.constant 0 : index
      %c0_6 = arith.constant 0 : index
      %21 = vector.load %arg14[%c0, %c0_6] : memref<8x32xf32, #tpu.memory_space<vmem>>, vector<8x32xf32>
      %c0_7 = arith.constant 0 : index
      %c0_8 = arith.constant 0 : index
      %22 = vector.load %arg9[%c0_7, %c0_8] : memref<1x32xf32, #tpu.memory_space<vmem>>, vector<1x32xf32>
      %23 = vector.broadcast %22 : vector<1x32xf32> to vector<8x32xf32>
      %24 = arith.addf %21, %23 : vector<8x32xf32>
      %c0_9 = arith.constant 0 : index
      %c0_10 = arith.constant 0 : index
      %c0_11 = arith.constant 0 : index
      %25 = vector.load %arg10[%c0_9, %c0_10, %c0_11] : memref<1x8x32xf32, #tpu.memory_space<vmem>>, vector<1x8x32xf32>
      %26 = vector.shape_cast %25 : vector<1x8x32xf32> to vector<8x32xf32>
      %27 = vector.shape_cast %24 : vector<8x32xf32> to vector<1x8x32xf32>
      tpu.vector_store %arg10[%c0_9, %c0_10, %c0_11], %27 {strides = array<i32>} : memref<1x8x32xf32, #tpu.memory_space<vmem>>, vector<1x8x32xf32>,
    } else {
    }
    return
  }
  func.func @transform_0(%arg0: i32, %arg1: i32, %arg2: i32, %arg3: memref<1xi32, #tpu.memory_space<smem>>, %arg4: memref<1xi32, #tpu.memory_space<smem>>) -> (i32, i32, i32, i32) {
    %0 = arith.index_cast %arg1 : i32 to index
    %1 = memref.load %arg3[%0] : memref<1xi32, #tpu.memory_space<smem>>
    %c0_i32 = arith.constant 0 : i32
    %c0_i32_0 = arith.constant 0 : i32
    return %arg0, %arg2, %1, %c0_i32 : i32, i32, i32, i32
  }
  func.func @transform_1(%arg0: i32, %arg1: i32, %arg2: i32, %arg3: memref<1xi32, #tpu.memory_space<smem>>, %arg4: memref<1xi32, #tpu.memory_space<smem>>) -> (i32, i32, i32, i32) {
    %0 = arith.index_cast %arg1 : i32 to index
    %1 = memref.load %arg4[%0] : memref<1xi32, #tpu.memory_space<smem>>
    %c0_i32 = arith.constant 0 : i32
    %c0_i32_0 = arith.constant 0 : i32
    return %arg0, %arg2, %1, %c0_i32 : i32, i32, i32, i32
  }
  func.func @transform_2(%arg0: i32, %arg1: i32, %arg2: i32, %arg3: memref<1xi32, #tpu.memory_space<smem>>, %arg4: memref<1xi32, #tpu.memory_space<smem>>) -> (i32, i32, i32, i32) {
    %0 = arith.index_cast %arg1 : i32 to index
    %1 = memref.load %arg4[%0] : memref<1xi32, #tpu.memory_space<smem>>
    %c0_i32 = arith.constant 0 : i32
    %c0_i32_0 = arith.constant 0 : i32
    return %arg0, %arg2, %1, %c0_i32 : i32, i32, i32, i32
  }
  func.func @transform_3(%arg0: i32, %arg1: i32, %arg2: i32, %arg3: memref<1xi32, #tpu.memory_space<smem>>, %arg4: memref<1xi32, #tpu.memory_space<smem>>) -> (i32, i32, i32) {
    %c0_i32 = arith.constant 0 : i32
    %c0_i32_0 = arith.constant 0 : i32
    %c0_i32_1 = arith.constant 0 : i32
    %c0_i32_2 = arith.constant 0 : i32
    return %c0_i32, %c0_i32_0, %c0_i32_1 : i32, i32, i32
  }
  func.func @transform_4(%arg0: i32, %arg1: i32, %arg2: i32, %arg3: memref<1xi32, #tpu.memory_space<smem>>, %arg4: memref<1xi32, #tpu.memory_space<smem>>) -> (i32, i32) {
    %c0_i32 = arith.constant 0 : i32
    %c0_i32_0 = arith.constant 0 : i32
    %c0_i32_1 = arith.constant 0 : i32
    return %c0_i32, %c0_i32_0 : i32, i32
  }
  func.func @transform_5(%arg0: i32, %arg1: i32, %arg2: i32, %arg3: memref<1xi32, #tpu.memory_space<smem>>, %arg4: memref<1xi32, #tpu.memory_space<smem>>) -> (i32, i32, i32) {
    %0 = arith.index_cast %arg1 : i32 to index
    %1 = memref.load %arg3[%0] : memref<1xi32, #tpu.memory_space<smem>>
    %c0_i32 = arith.constant 0 : i32
    %c0_i32_0 = arith.constant 0 : i32
    return %arg0, %1, %c0_i32 : i32, i32, i32
  }
}

</mosaic_0001>

<llo_original>
// kernel: causal_self_attention.2
$region0: #{causal_self_attention.2}
  #allocation0 [shape = 'u32[]', space=smem, size = 0x4, offset = 0x4, fixed_abs, tag = 'smem constant byte address 0x4 - core index']
  #allocation1 [shape = 'u32[144,128]{1,0:T(1,128)}', space=vmem, size = 0x12000, scoped, tag = 'internal scratch']
  %s0 = inlined_call_operand.vmem [shape: bf16[16,32], index: 0, kind: input, shape index: {}]
  %s1 = inlined_call_operand.vmem [shape: bf16[32,96], index: 1, kind: input, shape index: {}]
  %s2 = inlined_call_operand.vmem [shape: f32[1,96], index: 2, kind: input, shape index: {}]
  %s3 = inlined_call_operand.vmem [shape: f32[1,96], index: 3, kind: input, shape index: {}]
  %s4 = inlined_call_operand.vmem [shape: bf16[16,96], index: 4, kind: output, shape index: {}]
  %s5 = sld [smem:[#allocation0]]
  $region26: #{causal_self_attention.2} parent=0
    _
  %s7 = ssub.s32 1, %s5
  %s8 = scalar_select 0, %s7, %s5
  // Predicated region
  $region2: #{causal_self_attention.2} parent=0 // pred_check
    _
  $region3: #{causal_self_attention.2} parent=0 // pred_check_branch
    %10 = sbr.rel (0) target = $region5
  $region4: #{causal_self_attention.2} parent=0 // pred_region
    _
  $region5: #{causal_self_attention.2} parent=0 // pred_fallthru
    _
  // Predicated region
  $region6: #{causal_self_attention.2} parent=0 // pred_check
    _
  $region7: #{causal_self_attention.2} parent=0 // pred_check_branch
    %12 = sbr.rel (0) target = $region9
  $region8: #{causal_self_attention.2} parent=0 // pred_region
    _
  $region9: #{causal_self_attention.2} parent=0 // pred_fallthru
    _
  // Predicated region
  $region10: #{causal_self_attention.2} parent=0 // pred_check
    _
  $region11: #{causal_self_attention.2} parent=0 // pred_check_branch
    %14 = sbr.rel (0) target = $region13
  $region12: #{causal_self_attention.2} parent=0 // pred_region
    _
  $region13: #{causal_self_attention.2} parent=0 // pred_fallthru
    _
  // Predicated region
  $region14: #{causal_self_attention.2} parent=0 // pred_check
    _
  $region15: #{causal_self_attention.2} parent=0 // pred_check_branch
    %16 = sbr.rel (0) target = $region17
  $region16: #{causal_self_attention.2} parent=0 // pred_region
    _
  $region17: #{causal_self_attention.2} parent=0 // pred_fallthru
    _
  %v18 = vld [vmem:[%s0] sm:$0xf]
  %v19 = vld [vmem:[%s0 + $0x4] sm:$0xf]
  %v20 = vld [vmem:[%s1] sm:$0xf]
  %v21 = vld [vmem:[%s1 + $0x4] sm:$0xf]
  %v22 = vld [vmem:[%s1 + $0x8] sm:$0xf]
  %v23 = vld [vmem:[%s1 + $0xc] sm:$0xf]
  %v24 = vld [vmem:[%s2] sm:$0x1]
  %v26 = vlaneseq
  %v27 = vshrl.u32 %v26, 7
  %v28 = vsub.s32 0, %v27
  %v29 = vrot.slane %v24, %v28
  %v33 = vunpack.c.l.b16 %v18
  %v34 = vunpack.c.l.b16 %v19
  %v35 = vpack.c.b16 %v34, %v33
  %v40 = vunpack.c.l.b16 %v20
  %v41 = vunpack.c.l.b16 %v21
  %v42 = vunpack.c.l.b16 %v22
  %v43 = vunpack.c.l.b16 %v23
  %v44 = vpack.c.b16 %v41, %v40
  %v45 = vpack.c.b16 %v43, %v42
  %vm48 = vcmask 261120
  %v50 = vsel %vm48, %v35, 0
  %52 = vmatprep.subr.bf16.mxu0 0
  %53 = vmatpush1.bf16.msra.mxu0 %v44
  %54 = vmatprep.subr.bf16.mxu0 0
  %55 = vmatpush1.bf16.msra.mxu0 %v45
  %56 = vmatprep.subr.bf16.mxu0 0
  %57 = vmatpush1.bf16.msra.mxu0 0
  %58 = vmatprep.subr.bf16.mxu0 0
  %59 = vmatpush1.bf16.msra.mxu0 0
  %60 = vmatprep.subr.bf16.mxu0 0
  %61 = vmatpush1.bf16.msra.mxu0 0
  %62 = vmatprep.subr.bf16.mxu0 0
  %63 = vmatpush1.bf16.msra.mxu0 0
  %64 = vmatprep.subr.bf16.mxu0 0
  %65 = vmatpush1.bf16.msra.mxu0 0
  %66 = vmatprep.subr.bf16.mxu0 0
  %67 = vmatpush1.bf16.msra.mxu0 0
  %68 = vmatprep.subr.bf16.mxu0 0
  %69 = vmatpush1.bf16.msra.mxu0 0
  %70 = vmatprep.subr.bf16.mxu0 0
  %71 = vmatpush1.bf16.msra.mxu0 0
  %72 = vmatprep.subr.bf16.mxu0 0
  %73 = vmatpush1.bf16.msra.mxu0 0
  %74 = vmatprep.subr.bf16.mxu0 0
  %75 = vmatpush1.bf16.msra.mxu0 0
  %76 = vmatprep.subr.bf16.mxu0 0
  %77 = vmatpush1.bf16.msra.mxu0 0
  %78 = vmatprep.subr.bf16.mxu0 0
  %79 = vmatpush1.bf16.msra.mxu0 0
  %80 = vmatprep.subr.bf16.mxu0 0
  %81 = vmatpush1.bf16.msra.mxu0 0
  %82 = vmatprep.subr.bf16.mxu0 0
  %83 = vmatpush1.bf16.msra.mxu0 0
  %84 = vmatprep.mubr.bf16.mxu0 0
  %85 = vmatmul.mubr.bf16.gmra.mrb[0].mxu0 %v50
  %v86 = vpop.f32.mrb[0].mxu0
  %v87 = vadd.f32 %v29, %v86
  %v88 = vpop.f32.mrb[0].mxu0
  %v89 = vpop.f32.mrb[0].mxu0
  %v90 = vadd.f32 %v29, %v89
  %v91 = vpop.f32.mrb[0].mxu0
  %92 = vdwg.mxu0
  %v93 = vld [vmem:[%s3] sm:$0x1]
  %v95 = vlaneseq
  %v96 = vshrl.u32 %v95, 7
  %v97 = vsub.s32 0, %v96
  %v98 = vrot.slane %v93, %v97
  %v100 = vmul.f32 %v87, %v98
  %v101 = vmul.f32 %v90, %v98
  %v102 = vpack.c.bf16 %v101, %v100
  %v104 = vunpack.c.l.b16 %v102
  %v105 = vunpack.c.h.b16 %v102
  %v106 = vpack.c.b16 %v104, %v104
  %v107 = vpack.c.b16 %v105, %v105
  %vm110 = vcmask 781312
  %111 = vst.msk [vmem:[%s4] sm:$0xf] %vm110, %v106
  %112 = vst.msk [vmem:[%s4 + $0x4] sm:$0xf] %vm110, %v107
  // Predicated region
  $region18: #{causal_self_attention.2} parent=0 // pred_check
    _
  $region19: #{causal_self_attention.2} parent=0 // pred_check_branch
    %114 = sbr.rel (0) target = $region21
  $region20: #{causal_self_attention.2} parent=0 // pred_region
    _
  $region21: #{causal_self_attention.2} parent=0 // pred_fallthru
    _
  // Predicated region
  $region22: #{causal_self_attention.2} parent=0 // pred_check
    _
  $region23: #{causal_self_attention.2} parent=0 // pred_check_branch
    %116 = sbr.rel (0) target = $region25
  $region24: #{causal_self_attention.2} parent=0 // pred_region
    _
  $region25: #{causal_self_attention.2} parent=0 // pred_fallthru
    _

// kernel: causal_self_attention.3
$region0: #{causal_self_attention.3}
  #allocation0 [shape = 'u32[]', space=smem, size = 0x4, offset = 0x4, fixed_abs, tag = 'smem constant byte address 0x4 - core index']
  #allocation1 [shape = 'u32[144,128]{1,0:T(1,128)}', space=vmem, size = 0x12000, scoped, tag = 'internal scratch']
  #allocation2 [shape = 'f32[4,8,1]{2,1,0:T(8,128)}', space=vmem, size = 0x4000, scoped, tag = 'scratch operand']
  #allocation3 [shape = 'f32[4,8,1]{2,1,0:T(8,128)}', space=vmem, size = 0x4000, scoped, tag = 'scratch operand']
  #allocation4 [shape = 'f32[4,8,8]{2,1,0:T(8,128)}', space=vmem, size = 0x4000, scoped, tag = 'scratch operand']
  #allocation5 [shape = 'f32[8,32]{1,0:T(8,128)}', space=vmem, size = 0x1000, scoped, tag = 'scratch operand']
  #allocation6 [shape = 's32[1]{0}', space=sflag, size = 0x4, scoped, tag = 'scoped memory for causal_self_attention.3']
  #allocation7 [shape = 's32[1]{0:T(128)S(6)}', space=smem, size = 0x200, scoped, tag = 'prefetched SMEM operand 0']
  #allocation8 [shape = 's32[1]{0:T(128)S(6)}', space=smem, size = 0x200, scoped, tag = 'prefetched SMEM operand 1']
  %s0 = inlined_call_operand.<no memory space> [shape: s32[1], index: 0, kind: input, shape index: {}, may-alias: {0,1}]
  %s1 = inlined_call_operand.<no memory space> [shape: s32[1], index: 1, kind: input, shape index: {}, may-alias: {0,1}]
  %s2 = inlined_call_operand.vmem [shape: bf16[2,4,8,8], index: 2, kind: input, shape index: {}]
  %s3 = inlined_call_operand.vmem [shape: bf16[2,4,8,8], index: 3, kind: input, shape index: {}]
  %s4 = inlined_call_operand.vmem [shape: bf16[2,4,8,8], index: 4, kind: input, shape index: {}]
  %s5 = inlined_call_operand.vmem [shape: bf16[4,8,32], index: 5, kind: input, shape index: {}]
  %s6 = inlined_call_operand.vmem [shape: f32[1,32], index: 6, kind: input, shape index: {}]
  %s7 = inlined_call_operand.hbm [shape: f32[2,8,32], index: 7, kind: output, shape index: {}]
  %s8 = sld [smem:[#allocation0]]
  $region73: #{causal_self_attention.3} parent=0
    _
  %s10 = ssub.s32 1, %s8
  %s11 = scalar_select 0, %s10, %s8
  %12 = sst [smem:[#allocation7]] %s0
  %13 = sst [smem:[#allocation8]] %s1
  $region1: #{causal_self_attention.3} parent=0
    #allocation9 [shape = 'u8[8192]{0}', space=vmem, size = 0x2000, scoped, tag = 'output window, operand 0']
    #allocation10 [shape = 's32[2]{0}', space=sflag, size = 0x8, scoped, tag = 'scoped memory for causal_self_attention.3']
    %14 = vsyncpa [#allocation10], 0
    %s15 = scalar_lea.sflag [#allocation10], 1
    %16 = vsyncpa %s15, 0
    loop: start=0, step=1, limit=10
    $region2: #{causal_self_attention.3} parent=1 // loop_pre_header
      _
    $region3: #{causal_self_attention.3} parent=1 // loop_header
      %s18 = sphi 0, %s22
      %p19 = scmp.ge.s32.totalorder %s18, 10
      %s25 = sphi 0, %s44
      %s26 = sphi 0, %s40
      %s27 = sphi 0, %s36
      %s28 = sphi 0, %s25
      %s29 = sphi 0, %s26
      %s30 = sphi 0, %s27
      %s31 = sphi 0, %s28
      %s32 = sphi 0, %s29
      %s33 = sphi 0, %s30
      %s53 = sphi 0, %s55
      %s56 = sphi 0, %s53
      %s57 = sphi 0, %s56
      %s73 = sphi 0, %s57
      %s85 = sphi 0, %s87
      %s88 = sphi 0, %s85
      %s89 = sphi 0, %s88
      %s105 = sphi 0, %s89
      %s117 = sphi 0, %s119
      %s120 = sphi 0, %s117
      %s121 = sphi 0, %s120
      %s137 = sphi 0, %s121
      %s141 = sphi 0, %s141
      %s143 = sphi 0, %s141
      %s144 = sphi 0, %s143
      %s158 = sphi 0, %s144
      %s162 = sphi 0, %s162
      %s164 = sphi 0, %s162
      %s165 = sphi 0, %s164
      %s179 = sphi 0, %s165
      %s189 = sphi 0, %s191
      %s192 = sphi 0, %s189
      %s193 = sphi 0, %s192
      %s209 = sphi 0, %s193
    $region4: #{causal_self_attention.3} parent=1 // loop_header_branch
      %21 = sbr.rel (%p19) target = $region8
    $region5: #{causal_self_attention.3} parent=1 // loop_body
      %s23 = ssub.s32 %s18, 1
      %s24 = ssub.s32 %s18, 2
      %s34 = sadd.s32 1, %s27
      %p35 = scmp.ge.s32.totalorder %s34, 4
      %s36 = scalar_select %p35, 0, %s34
      %s37 = sadd.s32 1, %s26
      %s38 = scalar_select %p35, %s37, %s26
      %p39 = scmp.ge.s32.totalorder %s38, 1
      %s40 = scalar_select %p39, 0, %s38
      %s41 = sadd.s32 1, %s25
      %s42 = scalar_select %p39, %s41, %s25
      %p43 = scmp.ge.s32.totalorder %s42, 2
      %s44 = scalar_select %p43, 0, %s42
      %s45 = sld [smem:[#allocation7 + %s26]]
      %s46 = sld [smem:[#allocation7 + %s40]]
      %s47 = ssub.s32 %s25, %s44
      %s48 = ssub.s32 %s27, %s36
      %s49 = sor.u32 %s47, %s48
      %s50 = ssub.s32 %s45, %s46
      %s51 = sor.u32 %s49, %s50
      %p52 = scmp.eq.s32.totalorder %s51, 0
      %s54 = sadd.s32 %s53, 1
      %s55 = scalar_select %p52, %s53, %s54
      %p58 = pneg %p52
      %p59 = scmp.eq.s32.totalorder %s18, 7
      %p60 = por %p58, %p59
      %p61 = scmp.ne.s32.totalorder %s53, %s56
      %p62 = scmp.eq.s32.totalorder %s18, 0
      %p63 = por %p61, %p62
      %p64 = scmp.ne.s32.totalorder %s53, %s56
      %p65 = scmp.eq.s32.totalorder %s23, 7
      %p66 = por %p64, %p65
      %p67 = scmp.ne.s32.totalorder %s56, %s57
      %p68 = scmp.eq.s32.totalorder %s23, 0
      %p69 = por %p67, %p68
      %p70 = scmp.ne.s32.totalorder %s56, %s57
      %p71 = scmp.eq.s32.totalorder %s24, 7
      %p72 = por %p70, %p71
      %p74 = scmp.ne.s32.totalorder %s57, %s73
      %p75 = scmp.eq.s32.totalorder %s24, 0
      %p76 = por %p74, %p75
      %s77 = sld [smem:[#allocation8 + %s26]]
      %s78 = sld [smem:[#allocation8 + %s40]]
      %s79 = ssub.s32 %s25, %s44
      %s80 = ssub.s32 %s27, %s36
      %s81 = sor.u32 %s79, %s80
      %s82 = ssub.s32 %s77, %s78
      %s83 = sor.u32 %s81, %s82
      %p84 = scmp.eq.s32.totalorder %s83, 0
      %s86 = sadd.s32 %s85, 1
      %s87 = scalar_select %p84, %s85, %s86
      %p90 = pneg %p84
      %p91 = scmp.eq.s32.totalorder %s18, 7
      %p92 = por %p90, %p91
      %p93 = scmp.ne.s32.totalorder %s85, %s88
      %p94 = scmp.eq.s32.totalorder %s18, 0
      %p95 = por %p93, %p94
      %p96 = scmp.ne.s32.totalorder %s85, %s88
      %p97 = scmp.eq.s32.totalorder %s23, 7
      %p98 = por %p96, %p97
      %p99 = scmp.ne.s32.totalorder %s88, %s89
      %p100 = scmp.eq.s32.totalorder %s23, 0
      %p101 = por %p99, %p100
      %p102 = scmp.ne.s32.totalorder %s88, %s89
      %p103 = scmp.eq.s32.totalorder %s24, 7
      %p104 = por %p102, %p103
      %p106 = scmp.ne.s32.totalorder %s89, %s105
      %p107 = scmp.eq.s32.totalorder %s24, 0
      %p108 = por %p106, %p107
      %s109 = sld [smem:[#allocation8 + %s26]]
      %s110 = sld [smem:[#allocation8 + %s40]]
      %s111 = ssub.s32 %s25, %s44
      %s112 = ssub.s32 %s27, %s36
      %s113 = sor.u32 %s111, %s112
      %s114 = ssub.s32 %s109, %s110
      %s115 = sor.u32 %s113, %s114
      %p116 = scmp.eq.s32.totalorder %s115, 0
      %s118 = sadd.s32 %s117, 1
      %s119 = scalar_select %p116, %s117, %s118
      %p122 = pneg %p116
      %p123 = scmp.eq.s32.totalorder %s18, 7
      %p124 = por %p122, %p123
      %p125 = scmp.ne.s32.totalorder %s117, %s120
      %p126 = scmp.eq.s32.totalorder %s18, 0
      %p127 = por %p125, %p126
      %p128 = scmp.ne.s32.totalorder %s117, %s120
      %p129 = scmp.eq.s32.totalorder %s23, 7
      %p130 = por %p128, %p129
      %p131 = scmp.ne.s32.totalorder %s120, %s121
      %p132 = scmp.eq.s32.totalorder %s23, 0
      %p133 = por %p131, %p132
      %p134 = scmp.ne.s32.totalorder %s120, %s121
      %p135 = scmp.eq.s32.totalorder %s24, 7
      %p136 = por %p134, %p135
      %p138 = scmp.ne.s32.totalorder %s121, %s137
      %p139 = scmp.eq.s32.totalorder %s24, 0
      %p140 = por %p138, %p139
      %s142 = sadd.s32 %s141, 1
      %p145 = scmp.eq.s32.totalorder %s18, 7
      %p146 = scmp.ne.s32.totalorder %s141, %s143
      %p147 = scmp.eq.s32.totalorder %s18, 0
      %p148 = por %p146, %p147
      %p149 = scmp.ne.s32.totalorder %s141, %s143
      %p150 = scmp.eq.s32.totalorder %s23, 7
      %p151 = por %p149, %p150
      %p152 = scmp.ne.s32.totalorder %s143, %s144
      %p153 = scmp.eq.s32.totalorder %s23, 0
      %p154 = por %p152, %p153
      %p155 = scmp.ne.s32.totalorder %s143, %s144
      %p156 = scmp.eq.s32.totalorder %s24, 7
      %p157 = por %p155, %p156
      %p159 = scmp.ne.s32.totalorder %s144, %s158
      %p160 = scmp.eq.s32.totalorder %s24, 0
      %p161 = por %p159, %p160
      %s163 = sadd.s32 %s162, 1
      %p166 = scmp.eq.s32.totalorder %s18, 7
      %p167 = scmp.ne.s32.totalorder %s162, %s164
      %p168 = scmp.eq.s32.totalorder %s18, 0
      %p169 = por %p167, %p168
      %p170 = scmp.ne.s32.totalorder %s162, %s164
      %p171 = scmp.eq.s32.totalorder %s23, 7
      %p172 = por %p170, %p171
      %p173 = scmp.ne.s32.totalorder %s164, %s165
      %p174 = scmp.eq.s32.totalorder %s23, 0
      %p175 = por %p173, %p174
      %p176 = scmp.ne.s32.totalorder %s164, %s165
      %p177 = scmp.eq.s32.totalorder %s24, 7
      %p178 = por %p176, %p177
      %p180 = scmp.ne.s32.totalorder %s165, %s179
      %p181 = scmp.eq.s32.totalorder %s24, 0
      %p182 = por %p180, %p181
      %s183 = sld [smem:[#allocation7 + %s26]]
      %s184 = sld [smem:[#allocation7 + %s40]]
      %s185 = ssub.s32 %s25, %s44
      %s186 = ssub.s32 %s183, %s184
      %s187 = sor.u32 %s185, %s186
      %p188 = scmp.eq.s32.totalorder %s187, 0
      %s190 = sadd.s32 %s189, 1
      %s191 = scalar_select %p188, %s189, %s190
      %p194 = pneg %p188
      %p195 = scmp.eq.s32.totalorder %s18, 7
      %p196 = por %p194, %p195
      %p197 = scmp.ne.s32.totalorder %s189, %s192
      %p198 = scmp.eq.s32.totalorder %s18, 0
      %p199 = por %p197, %p198
      %p200 = scmp.ne.s32.totalorder %s189, %s192
      %p201 = scmp.eq.s32.totalorder %s23, 7
      %p202 = por %p200, %p201
      %p203 = scmp.ne.s32.totalorder %s192, %s193
      %p204 = scmp.eq.s32.totalorder %s23, 0
      %p205 = por %p203, %p204
      %p206 = scmp.ne.s32.totalorder %s192, %s193
      %p207 = scmp.eq.s32.totalorder %s24, 7
      %p208 = por %p206, %p207
      %p210 = scmp.ne.s32.totalorder %s193, %s209
      %p211 = scmp.eq.s32.totalorder %s24, 0
      %p212 = por %p210, %p211
      %p213 = scmp.le.s32.totalorder 1, %s18
      %p214 = scmp.lt.s32.totalorder %s18, 9
      %p215 = pnand %p213, %p214
      %p216 = pneg %p215
      // Predicated region
      $region9: #{causal_self_attention.3} parent=5 // pred_check
        _
      $region10: #{causal_self_attention.3} parent=5 // pred_check_branch
        %218 = sbr.rel (%p215) target = $region12
      $region11: #{causal_self_attention.3} parent=5 // pred_region
        %s219 = ssub.s32 %s18, 1
        // Predicated region
        $region13: #{causal_self_attention.3} parent=11 // pred_check
          %p220 = pneg %p154
        $region14: #{causal_self_attention.3} parent=11 // pred_check_branch
          %222 = sbr.rel (%p220) target = $region16
        $region15: #{causal_self_attention.3} parent=11 // pred_region
          _
        $region16: #{causal_self_attention.3} parent=11 // pred_fallthru
          _
        // Predicated region
        $region17: #{causal_self_attention.3} parent=11 // pred_check
          %p223 = pneg %p175
        $region18: #{causal_self_attention.3} parent=11 // pred_check_branch
          %225 = sbr.rel (%p223) target = $region20
        $region19: #{causal_self_attention.3} parent=11 // pred_region
          _
        $region20: #{causal_self_attention.3} parent=11 // pred_fallthru
          _
      $region12: #{causal_self_attention.3} parent=5 // pred_fallthru
        _
      %p226 = scmp.lt.s32.totalorder %s18, 8
      // Predicated region
      $region21: #{causal_self_attention.3} parent=5 // pred_check
        %p227 = pneg %p226
      $region22: #{causal_self_attention.3} parent=5 // pred_check_branch
        %229 = sbr.rel (%p227) target = $region24
      $region23: #{causal_self_attention.3} parent=5 // pred_region
        // Predicated region
        $region25: #{causal_self_attention.3} parent=23 // pred_check
          %p230 = pneg %p63
        $region26: #{causal_self_attention.3} parent=23 // pred_check_branch
          %232 = sbr.rel (%p230) target = $region28
        $region27: #{causal_self_attention.3} parent=23 // pred_region
          %s233 = sld [smem:[#allocation7 + %s26]]
          %p234 = scmp.lt.s32.totalorder %s25, 1
          %s235 = scalar_select %p234, %s25, 1
          %p236 = scmp.lt.s32.totalorder %s27, 3
          %s237 = scalar_select %p236, %s27, 3
          %p238 = scmp.lt.s32.totalorder %s233, 0
          %s239 = scalar_select %p238, %s233, 0
          %s240 = sadd.s32 %s239, %s237
          %s241 = smul.addr %s235, 4
          %s242 = sadd.s32 %s240, %s241
          %s243 = smul.addr %s242, 4
          %s244 = scalar_lea.vmem %s2, %s243
          %s245 = sld [smem:[#allocation7 + %s26]]
        $region28: #{causal_self_attention.3} parent=23 // pred_fallthru
          _
        // Predicated region
        $region29: #{causal_self_attention.3} parent=23 // pred_check
          %p246 = pneg %p95
        $region30: #{causal_self_attention.3} parent=23 // pred_check_branch
          %248 = sbr.rel (%p246) target = $region32
        $region31: #{causal_self_attention.3} parent=23 // pred_region
          %s249 = sld [smem:[#allocation8 + %s26]]
          %p250 = scmp.lt.s32.totalorder %s25, 1
          %s251 = scalar_select %p250, %s25, 1
          %p252 = scmp.lt.s32.totalorder %s27, 3
          %s253 = scalar_select %p252, %s27, 3
          %p254 = scmp.lt.s32.totalorder %s249, 0
          %s255 = scalar_select %p254, %s249, 0
          %s256 = sadd.s32 %s255, %s253
          %s257 = smul.addr %s251, 4
          %s258 = sadd.s32 %s256, %s257
          %s259 = smul.addr %s258, 4
          %s260 = scalar_lea.vmem %s3, %s259
          %s261 = sld [smem:[#allocation8 + %s26]]
        $region32: #{causal_self_attention.3} parent=23 // pred_fallthru
          _
        // Predicated region
        $region33: #{causal_self_attention.3} parent=23 // pred_check
          %p262 = pneg %p127
        $region34: #{causal_self_attention.3} parent=23 // pred_check_branch
          %264 = sbr.rel (%p262) target = $region36
        $region35: #{causal_self_attention.3} parent=23 // pred_region
          %s265 = sld [smem:[#allocation8 + %s26]]
          %p266 = scmp.lt.s32.totalorder %s25, 1
          %s267 = scalar_select %p266, %s25, 1
          %p268 = scmp.lt.s32.totalorder %s27, 3
          %s269 = scalar_select %p268, %s27, 3
          %p270 = scmp.lt.s32.totalorder %s265, 0
          %s271 = scalar_select %p270, %s265, 0
          %s272 = sadd.s32 %s271, %s269
          %s273 = smul.addr %s267, 4
          %s274 = sadd.s32 %s272, %s273
          %s275 = smul.addr %s274, 4
          %s276 = scalar_lea.vmem %s4, %s275
          %s277 = sld [smem:[#allocation8 + %s26]]
        $region36: #{causal_self_attention.3} parent=23 // pred_fallthru
          _
      $region24: #{causal_self_attention.3} parent=5 // pred_fallthru
        _
      %p278 = scmp.le.s32.totalorder 1, %s18
      %p279 = scmp.lt.s32.totalorder %s18, 9
      %p280 = pnand %p278, %p279
      %p281 = pneg %p280
      // Predicated region
      $region37: #{causal_self_attention.3} parent=5 // pred_check
        _
      $region38: #{causal_self_attention.3} parent=5 // pred_check_branch
        %283 = sbr.rel (%p280) target = $region40
      $region39: #{causal_self_attention.3} parent=5 // pred_region
        %s284 = ssub.s32 %s18, 1
        %s285 = sld [smem:[#allocation7 + %s29]]
        %p286 = scmp.lt.s32.totalorder %s28, 1
        %s287 = scalar_select %p286, %s28, 1
        %p288 = scmp.lt.s32.totalorder %s30, 3
        %s289 = scalar_select %p288, %s30, 3
        %p290 = scmp.lt.s32.totalorder %s285, 0
        %s291 = scalar_select %p290, %s285, 0
        %s292 = sadd.s32 %s291, %s289
        %s293 = smul.addr %s287, 4
        %s294 = sadd.s32 %s292, %s293
        %s295 = smul.addr %s294, 4
        %s296 = scalar_lea.vmem %s2, %s295
        %p297 = pneg %p69
        %p298 = pneg %p66
        %s299 = sld [smem:[#allocation8 + %s29]]
        %p300 = scmp.lt.s32.totalorder %s28, 1
        %s301 = scalar_select %p300, %s28, 1
        %p302 = scmp.lt.s32.totalorder %s30, 3
        %s303 = scalar_select %p302, %s30, 3
        %p304 = scmp.lt.s32.totalorder %s299, 0
        %s305 = scalar_select %p304, %s299, 0
        %s306 = sadd.s32 %s305, %s303
        %s307 = smul.addr %s301, 4
        %s308 = sadd.s32 %s306, %s307
        %s309 = smul.addr %s308, 4
        %s310 = scalar_lea.vmem %s3, %s309
        %p311 = pneg %p101
        %p312 = pneg %p98
        %s313 = sld [smem:[#allocation8 + %s29]]
        %p314 = scmp.lt.s32.totalorder %s28, 1
        %s315 = scalar_select %p314, %s28, 1
        %p316 = scmp.lt.s32.totalorder %s30, 3
        %s317 = scalar_select %p316, %s30, 3
        %p318 = scmp.lt.s32.totalorder %s313, 0
        %s319 = scalar_select %p318, %s313, 0
        %s320 = sadd.s32 %s319, %s317
        %s321 = smul.addr %s315, 4
        %s322 = sadd.s32 %s320, %s321
        %s323 = smul.addr %s322, 4
        %s324 = scalar_lea.vmem %s4, %s323
        %p325 = pneg %p133
        %p326 = pneg %p130
        %p327 = pneg %p154
        %p328 = pneg %p151
        %p329 = pneg %p175
        %p330 = pneg %p172
        %p331 = pneg %p205
        %p332 = pneg %p202
        %s333 = sand.u32 %s192, 1
        %s334 = scalar_lea.sflag [#allocation10], %s333
        %s335 = sand.u32 %s192, 1
        %s336 = smul.addr %s335, 8
        %s337 = scalar_lea.vmem [#allocation9], %s336
        %s338 = sld [smem:[#allocation7 + %s29]]
        %p339 = scmp.lt.s32.totalorder %s28, 1
        %s340 = scalar_select %p339, %s28, 1
        %p341 = scmp.lt.s32.totalorder %s30, 3
        %s342 = scalar_select %p341, %s30, 3
        %p343 = scmp.lt.s32.totalorder %s338, 0
        %s344 = scalar_select %p343, %s338, 0
        %s345 = sadd.s32 %s344, %s342
        %s346 = smul.addr %s340, 4
        %s347 = sadd.s32 %s345, %s346
        %s348 = smul.addr %s347, 4
        %s349 = scalar_lea.vmem %s2, %s348
        %s350 = sld [smem:[#allocation7 + %s29]]
        %s351 = sld [smem:[#allocation8 + %s29]]
        %p352 = scmp.lt.s32.totalorder %s28, 1
        %s353 = scalar_select %p352, %s28, 1
        %p354 = scmp.lt.s32.totalorder %s30, 3
        %s355 = scalar_select %p354, %s30, 3
        %p356 = scmp.lt.s32.totalorder %s351, 0
        %s357 = scalar_select %p356, %s351, 0
        %s358 = sadd.s32 %s357, %s355
        %s359 = smul.addr %s353, 4
        %s360 = sadd.s32 %s358, %s359
        %s361 = smul.addr %s360, 4
        %s362 = scalar_lea.vmem %s3, %s361
        %s363 = sld [smem:[#allocation8 + %s29]]
        %s364 = sld [smem:[#allocation8 + %s29]]
        %p365 = scmp.lt.s32.totalorder %s28, 1
        %s366 = scalar_select %p365, %s28, 1
        %p367 = scmp.lt.s32.totalorder %s30, 3
        %s368 = scalar_select %p367, %s30, 3
        %p369 = scmp.lt.s32.totalorder %s364, 0
        %s370 = scalar_select %p369, %s364, 0
        %s371 = sadd.s32 %s370, %s368
        %s372 = smul.addr %s366, 4
        %s373 = sadd.s32 %s371, %s372
        %s374 = smul.addr %s373, 4
        %s375 = scalar_lea.vmem %s4, %s374
        %s376 = sld [smem:[#allocation8 + %s29]]
        %s377 = sld [smem:[#allocation7 + %s29]]
        %s379 = sld [smem:[#allocation7 + %s29]]
        %s380 = sld [smem:[#allocation8 + %s29]]
        %p381 = scmp.eq.s32.totalorder %s380, 0
        %p382 = scmp.eq.s32.totalorder %s380, %s379
        %p383 = scmp.eq.s32.totalorder %s30, 0
        %p384 = pnand %p381, %p383
        %p385 = pneg %p384
        // Predicated region
        $region41: #{causal_self_attention.3} parent=39 // pred_check
          _
        $region42: #{causal_self_attention.3} parent=39 // pred_check_branch
          %387 = sbr.rel (%p384) target = $region44
        $region43: #{causal_self_attention.3} parent=39 // pred_region
          %vm388 = vcmask 261120
          %389 = vst.msk [vmem:[#allocation5] sm:$0xff] %vm388, 0.0
        $region44: #{causal_self_attention.3} parent=39 // pred_fallthru
          _
        // Predicated region
        $region45: #{causal_self_attention.3} parent=39 // pred_check
          %p390 = pneg %p381
        $region46: #{causal_self_attention.3} parent=39 // pred_check_branch
          %392 = sbr.rel (%p390) target = $region48
        $region47: #{causal_self_attention.3} parent=39 // pred_region
          %s393 = smul.u32 %s30, 8
          %s394 = scalar_lea.vmem [#allocation2], %s393
          %vm395 = vcmask 7168
          %396 = vst.msk [vmem:[%s394] sm:$0xff] %vm395, -inf
          %s397 = scalar_lea.vmem [#allocation3], %s393
          %398 = vst.msk [vmem:[%s397] sm:$0xff] %vm395, 0.0
          %s399 = scalar_lea.vmem [#allocation4], %s393
          %vm400 = vcmask 64512
          %401 = vst.msk [vmem:[%s399] sm:$0xff] %vm400, 0.0
        $region48: #{causal_self_attention.3} parent=39 // pred_fallthru
          _
        %p402 = scmp.ne.s32.totalorder %s380, %s379
        // Predicated region
        $region49: #{causal_self_attention.3} parent=39 // pred_check
          %p403 = pneg %p402
        $region50: #{causal_self_attention.3} parent=39 // pred_check_branch
          %405 = sbr.rel (%p403) target = $region52
        $region51: #{causal_self_attention.3} parent=39 // pred_region
          %v406 = vld [vmem:[%s349] sm:$0xf]
          %v407 = vld [vmem:[%s362] sm:$0xf]
          %v408 = vld [vmem:[%s375] sm:$0xf]
          %vm409 = vcmask 64512
          %v411 = vsel %vm409, %v406, 0
          %v414 = vsel %vm409, %v407, 0
          %416 = vmatprep.subr.bf16.mxu0 0
          %417 = vmatpush1.bf16.xpose.msra.mxu0 %v414
          %418 = vmatprep.subr.bf16.mxu0 0
          %419 = vmatpush1.bf16.xpose.msra.mxu0 0
          %420 = vmatprep.subr.bf16.mxu0 0
          %421 = vmatpush1.bf16.xpose.msra.mxu0 0
          %422 = vmatprep.subr.bf16.mxu0 0
          %423 = vmatpush1.bf16.xpose.msra.mxu0 0
          %424 = vmatprep.subr.bf16.mxu0 0
          %425 = vmatpush1.bf16.xpose.msra.mxu0 0
          %426 = vmatprep.subr.bf16.mxu0 0
          %427 = vmatpush1.bf16.xpose.msra.mxu0 0
          %428 = vmatprep.subr.bf16.mxu0 0
          %429 = vmatpush1.bf16.xpose.msra.mxu0 0
          %430 = vmatprep.subr.bf16.mxu0 0
          %431 = vmatpush1.bf16.xpose.msra.mxu0 0
          %432 = vmatprep.subr.bf16.mxu0 0
          %433 = vmatpush1.bf16.xpose.msra.mxu0 0
          %434 = vmatprep.subr.bf16.mxu0 0
          %435 = vmatpush1.bf16.xpose.msra.mxu0 0
          %436 = vmatprep.subr.bf16.mxu0 0
          %437 = vmatpush1.bf16.xpose.msra.mxu0 0
          %438 = vmatprep.subr.bf16.mxu0 0
          %439 = vmatpush1.bf16.xpose.msra.mxu0 0
          %440 = vmatprep.subr.bf16.mxu0 0
          %441 = vmatpush1.bf16.xpose.msra.mxu0 0
          %442 = vmatprep.subr.bf16.mxu0 0
          %443 = vmatpush1.bf16.xpose.msra.mxu0 0
          %444 = vmatprep.subr.bf16.mxu0 0
          %445 = vmatpush1.bf16.xpose.msra.mxu0 0
          %446 = vmatprep.subr.bf16.mxu0 0
          %447 = vmatpush1.bf16.xpose.msra.mxu0 0
          %448 = vmatprep.mubr.bf16.mxu0 0
          %449 = vmatmul.mubr.bf16.gmra.mrb[0].mxu0 %v411
          %v450 = vpop.f32.mrb[0].mxu0
          %v451 = vadd.f32 0.0, %v450
          %v452 = vpop.f32.mrb[0].mxu0
          %v453 = vpop.f32.mrb[0].mxu0
          %v454 = vpop.f32.mrb[0].mxu0
          %455 = vdwg.mxu0
          %s456 = smul.u32 %s30, 8
          %s457 = scalar_lea.vmem [#allocation2], %s456
          %v458 = vld [vmem:[%s457] sm:$0xff]
          %v459 = vsel %vm409, %v451, -inf
          %460 = vmax.xlane.f32.xlu0 %v459
          %v461 = vpop.xlane.xlu0 %460
          %v462 = vmax.f32 %v458, %v461
          %v463 = vsub.f32 %v458, %v462
          %v464 = vmul.f32 %v463, 1.442695
          %v465 = vpow.pop %v464
          %467 = vset.pattern.permute.xlu0 0
          %468 = vperm.xlu0 %467, %v462
          %v469 = vpop.permute.xlu0 %468
          %v471 = vsub.f32 %v451, %v469
          %v472 = vmul.f32 %v471, 1.442695
          %v473 = vpow.pop %v472
          %s474 = scalar_lea.vmem [#allocation3], %s456
          %v475 = vld [vmem:[%s474] sm:$0xff]
          %v476 = vmul.f32 %v465, %v475
          %v477 = vsel %vm409, %v473, 0.0
          %478 = vadd.xlane.f32.xlu0 %v477
          %v479 = vpop.xlane.xlu0 %478
          %v480 = vadd.f32 %v476, %v479
          %vm481 = vcmask 7168
          %482 = vst.msk [vmem:[%s474] sm:$0xff] %vm481, %v480
          %s483 = scalar_lea.vmem [#allocation4], %s456
          %v484 = vld [vmem:[%s483] sm:$0xff]
          %486 = vset.pattern.permute.xlu0 0
          %487 = vperm.xlu0 %486, %v465
          %v488 = vpop.permute.xlu0 %487
          %v490 = vmul.f32 %v488, %v484
          %v491 = vpack.c.bf16 %v473, %v473
          %v493 = vsel %vm409, %v491, 0
          %vm495 = vcmask 1043456
          %v497 = vsel %vm495, %v408, 0
          %499 = vmatprep.subr.bf16.mxu0 0
          %500 = vmatpush1.bf16.msra.mxu0 %v497
          %501 = vmatprep.subr.bf16.mxu0 0
          %502 = vmatpush1.bf16.msra.mxu0 0
          %503 = vmatprep.subr.bf16.mxu0 0
          %504 = vmatpush1.bf16.msra.mxu0 0
          %505 = vmatprep.subr.bf16.mxu0 0
          %506 = vmatpush1.bf16.msra.mxu0 0
          %507 = vmatprep.subr.bf16.mxu0 0
          %508 = vmatpush1.bf16.msra.mxu0 0
          %509 = vmatprep.subr.bf16.mxu0 0
          %510 = vmatpush1.bf16.msra.mxu0 0
          %511 = vmatprep.subr.bf16.mxu0 0
          %512 = vmatpush1.bf16.msra.mxu0 0
          %513 = vmatprep.subr.bf16.mxu0 0
          %514 = vmatpush1.bf16.msra.mxu0 0
          %515 = vmatprep.subr.bf16.mxu0 0
          %516 = vmatpush1.bf16.msra.mxu0 0
          %517 = vmatprep.subr.bf16.mxu0 0
          %518 = vmatpush1.bf16.msra.mxu0 0
          %519 = vmatprep.subr.bf16.mxu0 0
          %520 = vmatpush1.bf16.msra.mxu0 0
          %521 = vmatprep.subr.bf16.mxu0 0
          %522 = vmatpush1.bf16.msra.mxu0 0
          %523 = vmatprep.subr.bf16.mxu0 0
          %524 = vmatpush1.bf16.msra.mxu0 0
          %525 = vmatprep.subr.bf16.mxu0 0
          %526 = vmatpush1.bf16.msra.mxu0 0
          %527 = vmatprep.subr.bf16.mxu0 0
          %528 = vmatpush1.bf16.msra.mxu0 0
          %529 = vmatprep.subr.bf16.mxu0 0
          %530 = vmatpush1.bf16.msra.mxu0 0
          %531 = vmatprep.mubr.bf16.mxu0 0
          %532 = vmatmul.mubr.bf16.gmra.mrb[0].mxu0 %v493
          %v533 = vpop.f32.mrb[0].mxu0
          %v534 = vadd.f32 0.0, %v533
          %v535 = vpop.f32.mrb[0].mxu0
          %v536 = vpop.f32.mrb[0].mxu0
          %v537 = vpop.f32.mrb[0].mxu0
          %538 = vdwg.mxu0
          %v539 = vadd.f32 %v490, %v534
          %540 = vst.msk [vmem:[%s483] sm:$0xff] %vm409, %v539
          %541 = vst.msk [vmem:[%s457] sm:$0xff] %vm481, %v462
        $region52: #{causal_self_attention.3} parent=39 // pred_fallthru
          _
        // Predicated region
        $region53: #{causal_self_attention.3} parent=39 // pred_check
          %p542 = pneg %p382
        $region54: #{causal_self_attention.3} parent=39 // pred_check_branch
          %544 = sbr.rel (%p542) target = $region56
        $region55: #{causal_self_attention.3} parent=39 // pred_region
          %v545 = vld [vmem:[%s349] sm:$0xf]
          %v546 = vld [vmem:[%s362] sm:$0xf]
          %v547 = vld [vmem:[%s375] sm:$0xf]
          %vm548 = vcmask 64512
          %v550 = vsel %vm548, %v545, 0
          %v553 = vsel %vm548, %v546, 0
          %555 = vmatprep.subr.bf16.mxu0 0
          %556 = vmatpush1.bf16.xpose.msra.mxu0 %v553
          %557 = vmatprep.subr.bf16.mxu0 0
          %558 = vmatpush1.bf16.xpose.msra.mxu0 0
          %559 = vmatprep.subr.bf16.mxu0 0
          %560 = vmatpush1.bf16.xpose.msra.mxu0 0
          %561 = vmatprep.subr.bf16.mxu0 0
          %562 = vmatpush1.bf16.xpose.msra.mxu0 0
          %563 = vmatprep.subr.bf16.mxu0 0
          %564 = vmatpush1.bf16.xpose.msra.mxu0 0
          %565 = vmatprep.subr.bf16.mxu0 0
          %566 = vmatpush1.bf16.xpose.msra.mxu0 0
          %567 = vmatprep.subr.bf16.mxu0 0
          %568 = vmatpush1.bf16.xpose.msra.mxu0 0
          %569 = vmatprep.subr.bf16.mxu0 0
          %570 = vmatpush1.bf16.xpose.msra.mxu0 0
          %571 = vmatprep.subr.bf16.mxu0 0
          %572 = vmatpush1.bf16.xpose.msra.mxu0 0
          %573 = vmatprep.subr.bf16.mxu0 0
          %574 = vmatpush1.bf16.xpose.msra.mxu0 0
          %575 = vmatprep.subr.bf16.mxu0 0
          %576 = vmatpush1.bf16.xpose.msra.mxu0 0
          %577 = vmatprep.subr.bf16.mxu0 0
          %578 = vmatpush1.bf16.xpose.msra.mxu0 0
          %579 = vmatprep.subr.bf16.mxu0 0
          %580 = vmatpush1.bf16.xpose.msra.mxu0 0
          %581 = vmatprep.subr.bf16.mxu0 0
          %582 = vmatpush1.bf16.xpose.msra.mxu0 0
          %583 = vmatprep.subr.bf16.mxu0 0
          %584 = vmatpush1.bf16.xpose.msra.mxu0 0
          %585 = vmatprep.subr.bf16.mxu0 0
          %586 = vmatpush1.bf16.xpose.msra.mxu0 0
          %587 = vmatprep.mubr.bf16.mxu0 0
          %588 = vmatmul.mubr.bf16.gmra.mrb[0].mxu0 %v550
          %v589 = vpop.f32.mrb[0].mxu0
          %v590 = vadd.f32 0.0, %v589
          %v591 = vpop.f32.mrb[0].mxu0
          %v592 = vpop.f32.mrb[0].mxu0
          %v593 = vpop.f32.mrb[0].mxu0
          %594 = vdwg.mxu0
          %v595 = vlaneseq
          %v596 = vshrl.u32 %v595, 7
          %v597 = vlaneseq
          %v598 = vand.u32 %v597, 127
          %vm599 = vcmp.ge.s32.totalorder %v596, %v598
          %v600 = vsel %vm599, %v590, -1e+30
          %s601 = smul.u32 %s30, 8
          %s602 = scalar_lea.vmem [#allocation2], %s601
          %v603 = vld [vmem:[%s602] sm:$0xff]
          %v604 = vsel %vm548, %v600, -inf
          %605 = vmax.xlane.f32.xlu0 %v604
          %v606 = vpop.xlane.xlu0 %605
          %v607 = vmax.f32 %v603, %v606
          %v608 = vsub.f32 %v603, %v607
          %v609 = vmul.f32 %v608, 1.442695
          %v610 = vpow.pop %v609
          %612 = vset.pattern.permute.xlu0 0
          %613 = vperm.xlu0 %612, %v607
          %v614 = vpop.permute.xlu0 %613
          %v616 = vsub.f32 %v600, %v614
          %v617 = vmul.f32 %v616, 1.442695
          %v618 = vpow.pop %v617
          %s619 = scalar_lea.vmem [#allocation3], %s601
          %v620 = vld [vmem:[%s619] sm:$0xff]
          %v621 = vmul.f32 %v610, %v620
          %v622 = vsel %vm548, %v618, 0.0
          %623 = vadd.xlane.f32.xlu0 %v622
          %v624 = vpop.xlane.xlu0 %623
          %v625 = vadd.f32 %v621, %v624
          %vm626 = vcmask 7168
          %627 = vst.msk [vmem:[%s619] sm:$0xff] %vm626, %v625
          %s628 = scalar_lea.vmem [#allocation4], %s601
          %v629 = vld [vmem:[%s628] sm:$0xff]
          %631 = vset.pattern.permute.xlu0 0
          %632 = vperm.xlu0 %631, %v610
          %v633 = vpop.permute.xlu0 %632
          %v635 = vmul.f32 %v633, %v629
          %v636 = vpack.c.bf16 %v618, %v618
          %v638 = vsel %vm548, %v636, 0
          %vm640 = vcmask 1043456
          %v642 = vsel %vm640, %v547, 0
          %644 = vmatprep.subr.bf16.mxu0 0
          %645 = vmatpush1.bf16.msra.mxu0 %v642
          %646 = vmatprep.subr.bf16.mxu0 0
          %647 = vmatpush1.bf16.msra.mxu0 0
          %648 = vmatprep.subr.bf16.mxu0 0
          %649 = vmatpush1.bf16.msra.mxu0 0
          %650 = vmatprep.subr.bf16.mxu0 0
          %651 = vmatpush1.bf16.msra.mxu0 0
          %652 = vmatprep.subr.bf16.mxu0 0
          %653 = vmatpush1.bf16.msra.mxu0 0
          %654 = vmatprep.subr.bf16.mxu0 0
          %655 = vmatpush1.bf16.msra.mxu0 0
          %656 = vmatprep.subr.bf16.mxu0 0
          %657 = vmatpush1.bf16.msra.mxu0 0
          %658 = vmatprep.subr.bf16.mxu0 0
          %659 = vmatpush1.bf16.msra.mxu0 0
          %660 = vmatprep.subr.bf16.mxu0 0
          %661 = vmatpush1.bf16.msra.mxu0 0
          %662 = vmatprep.subr.bf16.mxu0 0
          %663 = vmatpush1.bf16.msra.mxu0 0
          %664 = vmatprep.subr.bf16.mxu0 0
          %665 = vmatpush1.bf16.msra.mxu0 0
          %666 = vmatprep.subr.bf16.mxu0 0
          %667 = vmatpush1.bf16.msra.mxu0 0
          %668 = vmatprep.subr.bf16.mxu0 0
          %669 = vmatpush1.bf16.msra.mxu0 0
          %670 = vmatprep.subr.bf16.mxu0 0
          %671 = vmatpush1.bf16.msra.mxu0 0
          %672 = vmatprep.subr.bf16.mxu0 0
          %673 = vmatpush1.bf16.msra.mxu0 0
          %674 = vmatprep.subr.bf16.mxu0 0
          %675 = vmatpush1.bf16.msra.mxu0 0
          %676 = vmatprep.mubr.bf16.mxu0 0
          %677 = vmatmul.mubr.bf16.gmra.mrb[0].mxu0 %v638
          %v678 = vpop.f32.mrb[0].mxu0
          %v679 = vadd.f32 0.0, %v678
          %v680 = vpop.f32.mrb[0].mxu0
          %v681 = vpop.f32.mrb[0].mxu0
          %v682 = vpop.f32.mrb[0].mxu0
          %683 = vdwg.mxu0
          %v684 = vadd.f32 %v635, %v679
          %685 = vst.msk [vmem:[%s628] sm:$0xff] %vm548, %v684
          %686 = vst.msk [vmem:[%s602] sm:$0xff] %vm626, %v607
          %v687 = vld [vmem:[%s619] sm:$0xff]
          %v688 = vrcp.pop %v687
          %v689 = vld [vmem:[%s628] sm:$0xff]
          %691 = vset.pattern.permute.xlu0 0
          %692 = vperm.xlu0 %691, %v688
          %v693 = vpop.permute.xlu0 %692
          %v695 = vmul.f32 %v689, %v693
          %v696 = vpack.c.bf16 %v695, %v695
          %v697 = vld [vmem:[#allocation5] sm:$0xff]
          %s698 = smul.addr %s30, 4
          %s699 = scalar_lea.vmem %s5, %s698
          %v700 = vld [vmem:[%s699] sm:$0xf]
          %v702 = vsel %vm548, %v696, 0
          %v705 = vsel %vm640, %v700, 0
          %707 = vmatprep.subr.bf16.mxu0 0
          %708 = vmatpush1.bf16.msra.mxu0 %v705
          %709 = vmatprep.subr.bf16.mxu0 0
          %710 = vmatpush1.bf16.msra.mxu0 0
          %711 = vmatprep.subr.bf16.mxu0 0
          %712 = vmatpush1.bf16.msra.mxu0 0
          %713 = vmatprep.subr.bf16.mxu0 0
          %714 = vmatpush1.bf16.msra.mxu0 0
          %715 = vmatprep.subr.bf16.mxu0 0
          %716 = vmatpush1.bf16.msra.mxu0 0
          %717 = vmatprep.subr.bf16.mxu0 0
          %718 = vmatpush1.bf16.msra.mxu0 0
          %719 = vmatprep.subr.bf16.mxu0 0
          %720 = vmatpush1.bf16.msra.mxu0 0
          %721 = vmatprep.subr.bf16.mxu0 0
          %722 = vmatpush1.bf16.msra.mxu0 0
          %723 = vmatprep.subr.bf16.mxu0 0
          %724 = vmatpush1.bf16.msra.mxu0 0
          %725 = vmatprep.subr.bf16.mxu0 0
          %726 = vmatpush1.bf16.msra.mxu0 0
          %727 = vmatprep.subr.bf16.mxu0 0
          %728 = vmatpush1.bf16.msra.mxu0 0
          %729 = vmatprep.subr.bf16.mxu0 0
          %730 = vmatpush1.bf16.msra.mxu0 0
          %731 = vmatprep.subr.bf16.mxu0 0
          %732 = vmatpush1.bf16.msra.mxu0 0
          %733 = vmatprep.subr.bf16.mxu0 0
          %734 = vmatpush1.bf16.msra.mxu0 0
          %735 = vmatprep.subr.bf16.mxu0 0
          %736 = vmatpush1.bf16.msra.mxu0 0
          %737 = vmatprep.subr.bf16.mxu0 0
          %738 = vmatpush1.bf16.msra.mxu0 0
          %739 = vmatprep.mubr.bf16.mxu0 0
          %740 = vmatmul.mubr.bf16.gmra.mrb[0].mxu0 %v702
          %v741 = vpop.f32.mrb[0].mxu0
          %v742 = vadd.f32 0.0, %v741
          %v743 = vpop.f32.mrb[0].mxu0
          %v744 = vpop.f32.mrb[0].mxu0
          %v745 = vpop.f32.mrb[0].mxu0
          %746 = vdwg.mxu0
          %v747 = vadd.f32 %v697, %v742
          %vm748 = vcmask 261120
          %749 = vst.msk [vmem:[#allocation5] sm:$0xff] %vm748, %v747
        $region56: #{causal_self_attention.3} parent=39 // pred_fallthru
          _
        %p750 = scmp.eq.s32.totalorder %s30, 3
        %p751 = pnand %p382, %p750
        %p752 = pneg %p751
        // Predicated region
        $region57: #{causal_self_attention.3} parent=39 // pred_check
          _
        $region58: #{causal_self_attention.3} parent=39 // pred_check_branch
          %754 = sbr.rel (%p751) target = $region60
        $region59: #{causal_self_attention.3} parent=39 // pred_region
          %v755 = vld [vmem:[#allocation5] sm:$0xff]
          %v756 = vld [vmem:[%s6] sm:$0x1]
          %v758 = vlaneseq
          %v759 = vshrl.u32 %v758, 7
          %v760 = vsub.s32 0, %v759
          %v761 = vrot.slane %v756, %v760
          %v763 = vadd.f32 %v755, %v761
          %vm764 = vcmask 261120
          %765 = vst.msk [vmem:[%s337] sm:$0xff] %vm764, %v763
        $region60: #{causal_self_attention.3} parent=39 // pred_fallthru
          _
        %s766 = sand.u32 %s192, 1
        %s767 = scalar_lea.sflag [#allocation10], %s766
        %s768 = sand.u32 %s192, 1
        %s769 = smul.addr %s768, 8
        %s770 = scalar_lea.vmem [#allocation9], %s769
        // Predicated region
        $region61: #{causal_self_attention.3} parent=39 // pred_check
          %p771 = pneg %p202
        $region62: #{causal_self_attention.3} parent=39 // pred_check_branch
          %773 = sbr.rel (%p771) target = $region64
        $region63: #{causal_self_attention.3} parent=39 // pred_region
          %s774 = sld [smem:[#allocation7 + %s29]]
          %s776 = ssub.s32 128, 128
          %777 = vsyncadd %s767, %s776
          %s778 = sadd.s32 %s774, %s28
          %s779 = smul.addr %s778, 128
          %s780 = scalar_lea.hbm %s7, %s779
          %s782 = sshll.u32 %s770, 4
          %s783 = int_to_ptr.vmem [resolvable:$true] %s782
          %785 = dma.vmem_to_hbm [thread:$0]  %s783, 128, %s780, %s767
        $region64: #{causal_self_attention.3} parent=39 // pred_fallthru
          _
      $region40: #{causal_self_attention.3} parent=5 // pred_fallthru
        _
      %p786 = scmp.le.s32.totalorder 2, %s18
      // Predicated region
      $region65: #{causal_self_attention.3} parent=5 // pred_check
        %p787 = pneg %p786
      $region66: #{causal_self_attention.3} parent=5 // pred_check_branch
        %789 = sbr.rel (%p787) target = $region68
      $region67: #{causal_self_attention.3} parent=5 // pred_region
        %s790 = ssub.s32 %s18, 2
        // Predicated region
        $region69: #{causal_self_attention.3} parent=67 // pred_check
          %p791 = pneg %p208
        $region70: #{causal_self_attention.3} parent=67 // pred_check_branch
          %793 = sbr.rel (%p791) target = $region72
        $region71: #{causal_self_attention.3} parent=67 // pred_region
          %s794 = sand.u32 %s193, 1
          %s795 = scalar_lea.sflag [#allocation10], %s794
          %s796 = sand.u32 %s193, 1
          %s797 = smul.addr %s796, 8
          %s798 = scalar_lea.vmem [#allocation9], %s797
          %799 = dma.done %s795, 128
        $region72: #{causal_self_attention.3} parent=67 // pred_fallthru
          _
      $region68: #{causal_self_attention.3} parent=5 // pred_fallthru
        _
    $region6: #{causal_self_attention.3} parent=1 // loop_footer
      %s22 = sadd.s32 1, %s18
    $region7: #{causal_self_attention.3} parent=1 // loop_footer_branch
      %17 = sbr.rel target = $region3
    $region8: #{causal_self_attention.3} parent=1 // loop_exit
      _
    %800 = vsyncpa [#allocation10], 1
    %s801 = scalar_lea.sflag [#allocation10], 1
    %802 = vsyncpa %s801, 1

</llo_original>
